<compile_context>
chip_gen: v5e
topology: v5e:2x2
jax: 0.10.0
libtpu: 0.0.40
codegen_flags: <defaults>
</compile_context>

<pallas_src>
import functools

import jax
import jax.numpy as jnp
from jax import lax
from jax.experimental import pallas as pl
from jax.experimental.pallas import tpu as pltpu


def _vs_loss_kernel(H, W, C, T, mats_ref, depth_ref, tgt_ref, src_ref, out_ref):
    f32 = jnp.float32
    b = pl.program_id(0)
    t = pl.program_id(1)

    # camera matrices from 1-D SMEM (scalar reads)
    def KI(i, j):              # intrinsics_inverse (4x4), row-major
        return mats_ref[b * 32 + i * 4 + j]

    def PM(i, j):              # dst_proj_src (4x4)
        return mats_ref[b * 32 + 16 + i * 4 + j]

    # Lane-dense pixel indices for this tile: global pixel p = t*T + lane.
    pix = (lax.broadcasted_iota(jnp.int32, (1, T), 1) + t * T).astype(f32)
    v = jnp.floor((pix + 0.5) * (1.0 / W))       # y coordinate (exact for H*W <= 2^21)
    u = pix - v * W                              # x coordinate

    # pixel2cam: transform_points(K^-1, [u, v, 1, 1]) * depth
    xh = KI(0, 0) * u + KI(0, 1) * v + KI(0, 2) + KI(0, 3)
    yh = KI(1, 0) * u + KI(1, 1) * v + KI(1, 2) + KI(1, 3)
    zh = KI(2, 0) * u + KI(2, 1) * v + KI(2, 2) + KI(2, 3)
    wh = KI(3, 0) * u + KI(3, 1) * v + KI(3, 2) + KI(3, 3)
    sc = jnp.where(jnp.abs(wh) > 1e-8, pl.reciprocal(wh, approx=True), 1.0)
    d = depth_ref[0]                             # (1, T)
    X = xh * sc * d
    Y = yh * sc * d
    Z = zh * sc * d

    # cam2pixel: transform_points(dst_proj_src, [X,Y,Z,1]) + perspective divide,
    # fused into ONE reciprocal:  x/(z + eps*w)  (w-branch folded into the denom).
    xp = PM(0, 0) * X + PM(0, 1) * Y + PM(0, 2) * Z + PM(0, 3)
    yp = PM(1, 0) * X + PM(1, 1) * Y + PM(1, 2) * Z + PM(1, 3)
    zp = PM(2, 0) * X + PM(2, 1) * Y + PM(2, 2) * Z + PM(2, 3)
    wp = PM(3, 0) * X + PM(3, 1) * Y + PM(3, 2) * Z + PM(3, 3)
    eps = 1e-12
    denom = jnp.where(jnp.abs(wp) > 1e-8, zp + eps * wp, zp + eps)
    r = pl.reciprocal(denom, approx=True)
    # normalize_pixel_coordinates followed by grid_sample(align_corners=True)
    # un-normalization is the identity, so sample directly at (ix, iy).
    ix = xp * r
    iy = yp * r

    # Guard degenerate projections (NaN/Inf) -> sentinel far outside the image so the
    # corner masks zero them out instead of propagating NaN into the loss.
    ok = (jnp.abs(ix) < 1e30) & (jnp.abs(iy) < 1e30)
    ix = jnp.where(ok, ix, -2.0)
    iy = jnp.where(ok, iy, -2.0)

    # bilinear corners + weights (zero-padding via bounds masks)
    x0f = jnp.floor(ix)
    y0f = jnp.floor(iy)
    x1f = x0f + 1.0
    y1f = y0f + 1.0
    wx1 = ix - x0f
    wx0 = 1.0 - wx1
    wy1 = iy - y0f
    wy0 = 1.0 - wy1
    w_x0 = jnp.where((x0f >= 0.0) & (x0f <= W - 1.0), wx0, 0.0)
    w_x1 = jnp.where((x1f >= 0.0) & (x1f <= W - 1.0), wx1, 0.0)
    w_y0 = jnp.where((y0f >= 0.0) & (y0f <= H - 1.0), wy0, 0.0)
    w_y1 = jnp.where((y1f >= 0.0) & (y1f <= H - 1.0), wy1, 0.0)
    x0i = jnp.clip(x0f, 0.0, W - 1.0).astype(jnp.int32)
    x1i = jnp.clip(x1f, 0.0, W - 1.0).astype(jnp.int32)
    y0i = jnp.clip(y0f, 0.0, H - 1.0).astype(jnp.int32)
    y1i = jnp.clip(y1f, 0.0, H - 1.0).astype(jnp.int32)

    # Separable sampling weights (pixel index stays in lanes), built with selects:
    #   wxT[x, p] = weight of source column x for output pixel p   -> (W, T)
    #   wyT[y, p] = weight of source row    y for output pixel p   -> (H, T)
    col_src = lax.broadcasted_iota(jnp.int32, (W, T), 0)
    wxT = (jnp.where(col_src == x0i, w_x0, 0.0)
           + jnp.where(col_src == x1i, w_x1, 0.0))
    row_src = lax.broadcasted_iota(jnp.int32, (H, T), 0)
    wyT = (jnp.where(row_src == y0i, w_y0, 0.0)
           + jnp.where(row_src == y1i, w_y1, 0.0))

    # Horizontal (x) blend of all channels/rows with ONE bf16 MXU matmul:
    #   src_ref[0] is rgb_prev viewed as (C*H, W) in bf16 (row c*H + y = img[c, y, :]).
    a_all = jnp.dot(src_ref[0], wxT.astype(jnp.bfloat16),
                    preferred_element_type=f32)                    # (C*H, T) f32

    # Vertical (y) blend + masked L1 accumulation (kept in f32 on the VPU).
    tgt = tgt_ref[0]                                               # (C, T)
    abs_sum = jnp.zeros((1, T), f32)
    recon_sum = jnp.zeros((1, T), f32)
    for c in range(C):                                             # static unroll, small C
        recon_c = jnp.sum(a_all[c * H:(c + 1) * H, :] * wyT, axis=0, keepdims=True)
        abs_sum = abs_sum + jnp.abs(tgt[c:c + 1, :] - recon_c)
        recon_sum = recon_sum + recon_c
    tgt_sum = jnp.sum(tgt, axis=0, keepdims=True)                  # (1, T)

    # compute_vs_loss: channel-summed |diff|, validity mask, masked partial sums
    valid = ((recon_sum > 0.0) & (tgt_sum > 0.0)).astype(f32)
    psum = jnp.sum(abs_sum * valid, axis=1, keepdims=True)         # (1, 1)
    pcnt = jnp.sum(valid, axis=1, keepdims=True)                   # (1, 1)

    lanes = lax.broadcasted_iota(jnp.int32, (1, 128), 1)
    out_ref[0, 0] = jnp.where(lanes == 0, psum,
                              jnp.where(lanes == 1, pcnt, 0.0))


def _pick_tile(hw, cap=1024):
    """Largest multiple-of-128 divisor of hw that is <= cap (full hw if not tileable)."""
    if hw % 128 != 0 or hw <= cap:
        return hw
    t = cap - (cap % 128)
    while hw % t != 0:
        t -= 128
    return t


def view_synthesis_loss(depth_curr, rgb_curr, rgb_prev,
                        cam_intrinsic, pose_curr, pose_prev):
    """Forward of View_synthesis_Loss. Inputs follow the PyTorch shapes:
       depth_curr (B,1,H,W), rgb_* (B,C,H,W), cam_intrinsic/pose_* (B,1,4,4)."""
    B, C, H, W = rgb_curr.shape
    HW = H * W
    assert HW <= (1 << 21), "float pixel-index math requires H*W <= 2^21"

    # ---- glue: kornia PinholeCamera / DepthWarper.compute_projection_matrix ----
    K = cam_intrinsic[:, 0].astype(jnp.float32)       # squeeze(1)
    E_src = pose_curr[:, 0].astype(jnp.float32)       # pose_src  (current view)
    E_dst = pose_prev[:, 0].astype(jnp.float32)       # pose_dest (previous view)

    K_inv = jnp.linalg.inv(K)                         # intrinsics_inverse()

    def inverse_transformation(Tm):                   # rigid 4x4 inverse
        R = Tm[:, :3, :3]
        tvec = Tm[:, :3, 3:]
        Rt = jnp.swapaxes(R, -1, -2)
        top = jnp.concatenate([Rt, -Rt @ tvec], axis=-1)
        bot = jnp.broadcast_to(
            jnp.array([[[0.0, 0.0, 0.0, 1.0]]], jnp.float32), (Tm.shape[0], 1, 4))
        return jnp.concatenate([top, bot], axis=-2)

    dst_proj_src = K @ (E_dst @ inverse_transformation(E_src))

    mats = jnp.concatenate(
        [K_inv.reshape(B, 16), dst_proj_src.reshape(B, 16)], axis=1
    ).reshape(B * 32).astype(jnp.float32)             # 1-D -> SMEM (avoids 2-D padding)

    # ---- layout glue: lane-dense depth/target, free-view bf16 source (no transpose) ----
    depth = depth_curr.reshape(B, 1, HW).astype(jnp.float32)               # (B,1,HW)
    tgt = rgb_curr.reshape(B, C, HW).astype(jnp.float32)                   # (B,C,HW)
    src = rgb_prev.reshape(B, C * H, W).astype(jnp.bfloat16)               # (B,C*H,W)

    T = _pick_tile(HW)
    n_tiles = HW // T

    kernel = functools.partial(_vs_loss_kernel, H, W, C, T)
    partials = pl.pallas_call(
        kernel,
        out_shape=jax.ShapeDtypeStruct((B, n_tiles, 1, 128), jnp.float32),
        grid=(B, n_tiles),
        in_specs=[
            pl.BlockSpec(memory_space=pltpu.MemorySpace.SMEM),       # camera matrices (1-D)
            pl.BlockSpec((1, 1, T), lambda b, t: (b, 0, t)),         # depth tile
            pl.BlockSpec((1, C, T), lambda b, t: (b, 0, t)),         # rgb_curr (target) tile
            pl.BlockSpec((1, C * H, W), lambda b, t: (b, 0, 0)),     # rgb_prev (source), tile-invariant
        ],
        out_specs=pl.BlockSpec((1, 1, 1, 128), lambda b, t: (b, t, 0, 0)),
        compiler_params=pltpu.CompilerParams(
            dimension_semantics=("parallel", "parallel"),
            vmem_limit_bytes=32 * 1024 * 1024),
    )(mats, depth, tgt, src)

    # final reduce + masked mean in plain JAX (matches diff[valid].mean() over the batch)
    total_sum = jnp.sum(partials[:, :, 0, 0])
    total_cnt = jnp.sum(partials[:, :, 0, 1])
    loss = jnp.where(total_cnt > 0.0, total_sum / jnp.maximum(total_cnt, 1.0), 0.0)
    # TODO(synk): compute_vs_loss's optional `mask` argument is never used by forward();
    #             it is not wired into the kernel.
    # TODO(synk): for tiny images on single-TC chips (v5e/v6e) the batch could be folded
    #             into one grid step to amortize per-step overhead; kept (B, tiles) both
    #             "parallel" so v7x can shard across its two TensorCores.
    return loss


if __name__ == "__main__":
    key = jax.random.PRNGKey(0)
    B, C, H, W = 2, 3, 16, 16
    k1, k2, k3 = jax.random.split(key, 3)

    depth_curr = jax.random.uniform(k1, (B, 1, H, W), jnp.float32, 1.0, 3.0)
    rgb_curr = jax.random.uniform(k2, (B, C, H, W), jnp.float32, 0.05, 1.0)
    rgb_prev = jax.random.uniform(k3, (B, C, H, W), jnp.float32, 0.05, 1.0)

    # deterministic kornia-style 4x4 intrinsics and rigid poses
    fx = fy = 20.0
    cx, cy = (W - 1) / 2.0, (H - 1) / 2.0
    K = jnp.array([[fx, 0.0, cx, 0.0],
                   [0.0, fy, cy, 0.0],
                   [0.0, 0.0, 1.0, 0.0],
                   [0.0, 0.0, 0.0, 1.0]], jnp.float32)
    cam_intrinsic = jnp.broadcast_to(K, (B, 1, 4, 4))

    eye = jnp.eye(4, dtype=jnp.float32)
    pose_curr = jnp.broadcast_to(eye, (B, 1, 4, 4))
    pose_prev = jnp.broadcast_to(
        eye.at[:3, 3].set(jnp.array([0.05, 0.02, 0.0], jnp.float32)),
        (B, 1, 4, 4))

    loss = view_synthesis_loss(depth_curr, rgb_curr, rgb_prev,
                               cam_intrinsic, pose_curr, pose_prev)
    loss = jax.block_until_ready(loss)
    assert jnp.isfinite(loss), f"loss not finite: {loss}"
    assert loss >= 0.0, f"loss negative: {loss}"
    print("KERNEL_OK")
</pallas_src>

<mosaic_0001>
module attributes {stable_mosaic.version = 11 : i64} {
  func.func @_vs_loss_kernel(%arg0: i32, %arg1: i32, %arg2: memref<64xf32, #tpu.memory_space<smem>>, %arg3: memref<1x1x256xf32, #tpu.memory_space<vmem>>, %arg4: memref<1x3x256xf32, #tpu.memory_space<vmem>>, %arg5: memref<1x48x16xbf16, #tpu.memory_space<vmem>>, %arg6: memref<1x1x1x128xf32, #tpu.memory_space<vmem>>) attributes {dimension_semantics = [#tpu.dimension_semantics<parallel>, #tpu.dimension_semantics<parallel>], iteration_bounds = array<i64: 2, 1>, scalar_prefetch = 0 : i64, scratch_operands = 0 : i64, tpu.core_type = #tpu.core_type<tc>, window_params = [{transform_indices = @transform_0, window_bounds = array<i64: 64>}, {transform_indices = @transform_1, window_bounds = array<i64: 1, 1, 256>}, {transform_indices = @transform_2, window_bounds = array<i64: 1, 3, 256>}, {transform_indices = @transform_3, window_bounds = array<i64: 1, 48, 16>}, {transform_indices = @transform_4, window_bounds = array<i64: 1, 1, 1, 128>}]} {
    %0 = tpu.iota {dimensions = array<i32: 1>} : vector<1x256xi32>
    %c256_i32 = arith.constant 256 : i32
    %1 = arith.muli %arg1, %c256_i32 : i32
    %2 = vector.broadcast %1 : i32 to vector<1x256xi32>
    %3 = arith.addi %0, %2 : vector<1x256xi32>
    %4 = arith.sitofp %3 : vector<1x256xi32> to vector<1x256xf32>
    %cst = arith.constant 5.000000e-01 : f32
    %5 = vector.broadcast %cst : f32 to vector<1x256xf32>
    %6 = arith.addf %4, %5 : vector<1x256xf32>
    %cst_0 = arith.constant 6.250000e-02 : f32
    %7 = vector.broadcast %cst_0 : f32 to vector<1x256xf32>
    %8 = arith.mulf %6, %7 : vector<1x256xf32>
    %9 = math.floor %8 : vector<1x256xf32>
    %cst_1 = arith.constant 1.600000e+01 : f32
    %10 = vector.broadcast %cst_1 : f32 to vector<1x256xf32>
    %11 = arith.mulf %9, %10 : vector<1x256xf32>
    %12 = arith.subf %4, %11 : vector<1x256xf32>
    %c32_i32 = arith.constant 32 : i32
    %13 = arith.muli %arg0, %c32_i32 : i32
    %c0_i32 = arith.constant 0 : i32
    %14 = arith.addi %13, %c0_i32 : i32
    %c0_i32_2 = arith.constant 0 : i32
    %15 = arith.addi %14, %c0_i32_2 : i32
    %16 = arith.index_cast %15 : i32 to index
    %17 = memref.load %arg2[%16] : memref<64xf32, #tpu.memory_space<smem>>
    %18 = vector.broadcast %17 : f32 to vector<1x256xf32>
    %19 = arith.mulf %18, %12 : vector<1x256xf32>
    %c32_i32_3 = arith.constant 32 : i32
    %20 = arith.muli %arg0, %c32_i32_3 : i32
    %c0_i32_4 = arith.constant 0 : i32
    %21 = arith.addi %20, %c0_i32_4 : i32
    %c1_i32 = arith.constant 1 : i32
    %22 = arith.addi %21, %c1_i32 : i32
    %23 = arith.index_cast %22 : i32 to index
    %24 = memref.load %arg2[%23] : memref<64xf32, #tpu.memory_space<smem>>
    %25 = vector.broadcast %24 : f32 to vector<1x256xf32>
    %26 = arith.mulf %25, %9 : vector<1x256xf32>
    %27 = arith.addf %19, %26 : vector<1x256xf32>
    %c32_i32_5 = arith.constant 32 : i32
    %28 = arith.muli %arg0, %c32_i32_5 : i32
    %c0_i32_6 = arith.constant 0 : i32
    %29 = arith.addi %28, %c0_i32_6 : i32
    %c2_i32 = arith.constant 2 : i32
    %30 = arith.addi %29, %c2_i32 : i32
    %31 = arith.index_cast %30 : i32 to index
    %32 = memref.load %arg2[%31] : memref<64xf32, #tpu.memory_space<smem>>
    %33 = vector.broadcast %32 : f32 to vector<1x256xf32>
    %34 = arith.addf %27, %33 : vector<1x256xf32>
    %c32_i32_7 = arith.constant 32 : i32
    %35 = arith.muli %arg0, %c32_i32_7 : i32
    %c0_i32_8 = arith.constant 0 : i32
    %36 = arith.addi %35, %c0_i32_8 : i32
    %c3_i32 = arith.constant 3 : i32
    %37 = arith.addi %36, %c3_i32 : i32
    %38 = arith.index_cast %37 : i32 to index
    %39 = memref.load %arg2[%38] : memref<64xf32, #tpu.memory_space<smem>>
    %40 = vector.broadcast %39 : f32 to vector<1x256xf32>
    %41 = arith.addf %34, %40 : vector<1x256xf32>
    %c32_i32_9 = arith.constant 32 : i32
    %42 = arith.muli %arg0, %c32_i32_9 : i32
    %c4_i32 = arith.constant 4 : i32
    %43 = arith.addi %42, %c4_i32 : i32
    %c0_i32_10 = arith.constant 0 : i32
    %44 = arith.addi %43, %c0_i32_10 : i32
    %45 = arith.index_cast %44 : i32 to index
    %46 = memref.load %arg2[%45] : memref<64xf32, #tpu.memory_space<smem>>
    %47 = vector.broadcast %46 : f32 to vector<1x256xf32>
    %48 = arith.mulf %47, %12 : vector<1x256xf32>
    %c32_i32_11 = arith.constant 32 : i32
    %49 = arith.muli %arg0, %c32_i32_11 : i32
    %c4_i32_12 = arith.constant 4 : i32
    %50 = arith.addi %49, %c4_i32_12 : i32
    %c1_i32_13 = arith.constant 1 : i32
    %51 = arith.addi %50, %c1_i32_13 : i32
    %52 = arith.index_cast %51 : i32 to index
    %53 = memref.load %arg2[%52] : memref<64xf32, #tpu.memory_space<smem>>
    %54 = vector.broadcast %53 : f32 to vector<1x256xf32>
    %55 = arith.mulf %54, %9 : vector<1x256xf32>
    %56 = arith.addf %48, %55 : vector<1x256xf32>
    %c32_i32_14 = arith.constant 32 : i32
    %57 = arith.muli %arg0, %c32_i32_14 : i32
    %c4_i32_15 = arith.constant 4 : i32
    %58 = arith.addi %57, %c4_i32_15 : i32
    %c2_i32_16 = arith.constant 2 : i32
    %59 = arith.addi %58, %c2_i32_16 : i32
    %60 = arith.index_cast %59 : i32 to index
    %61 = memref.load %arg2[%60] : memref<64xf32, #tpu.memory_space<smem>>
    %62 = vector.broadcast %61 : f32 to vector<1x256xf32>
    %63 = arith.addf %56, %62 : vector<1x256xf32>
    %c32_i32_17 = arith.constant 32 : i32
    %64 = arith.muli %arg0, %c32_i32_17 : i32
    %c4_i32_18 = arith.constant 4 : i32
    %65 = arith.addi %64, %c4_i32_18 : i32
    %c3_i32_19 = arith.constant 3 : i32
    %66 = arith.addi %65, %c3_i32_19 : i32
    %67 = arith.index_cast %66 : i32 to index
    %68 = memref.load %arg2[%67] : memref<64xf32, #tpu.memory_space<smem>>
    %69 = vector.broadcast %68 : f32 to vector<1x256xf32>
    %70 = arith.addf %63, %69 : vector<1x256xf32>
    %c32_i32_20 = arith.constant 32 : i32
    %71 = arith.muli %arg0, %c32_i32_20 : i32
    %c8_i32 = arith.constant 8 : i32
    %72 = arith.addi %71, %c8_i32 : i32
    %c0_i32_21 = arith.constant 0 : i32
    %73 = arith.addi %72, %c0_i32_21 : i32
    %74 = arith.index_cast %73 : i32 to index
    %75 = memref.load %arg2[%74] : memref<64xf32, #tpu.memory_space<smem>>
    %76 = vector.broadcast %75 : f32 to vector<1x256xf32>
    %77 = arith.mulf %76, %12 : vector<1x256xf32>
    %c32_i32_22 = arith.constant 32 : i32
    %78 = arith.muli %arg0, %c32_i32_22 : i32
    %c8_i32_23 = arith.constant 8 : i32
    %79 = arith.addi %78, %c8_i32_23 : i32
    %c1_i32_24 = arith.constant 1 : i32
    %80 = arith.addi %79, %c1_i32_24 : i32
    %81 = arith.index_cast %80 : i32 to index
    %82 = memref.load %arg2[%81] : memref<64xf32, #tpu.memory_space<smem>>
    %83 = vector.broadcast %82 : f32 to vector<1x256xf32>
    %84 = arith.mulf %83, %9 : vector<1x256xf32>
    %85 = arith.addf %77, %84 : vector<1x256xf32>
    %c32_i32_25 = arith.constant 32 : i32
    %86 = arith.muli %arg0, %c32_i32_25 : i32
    %c8_i32_26 = arith.constant 8 : i32
    %87 = arith.addi %86, %c8_i32_26 : i32
    %c2_i32_27 = arith.constant 2 : i32
    %88 = arith.addi %87, %c2_i32_27 : i32
    %89 = arith.index_cast %88 : i32 to index
    %90 = memref.load %arg2[%89] : memref<64xf32, #tpu.memory_space<smem>>
    %91 = vector.broadcast %90 : f32 to vector<1x256xf32>
    %92 = arith.addf %85, %91 : vector<1x256xf32>
    %c32_i32_28 = arith.constant 32 : i32
    %93 = arith.muli %arg0, %c32_i32_28 : i32
    %c8_i32_29 = arith.constant 8 : i32
    %94 = arith.addi %93, %c8_i32_29 : i32
    %c3_i32_30 = arith.constant 3 : i32
    %95 = arith.addi %94, %c3_i32_30 : i32
    %96 = arith.index_cast %95 : i32 to index
    %97 = memref.load %arg2[%96] : memref<64xf32, #tpu.memory_space<smem>>
    %98 = vector.broadcast %97 : f32 to vector<1x256xf32>
    %99 = arith.addf %92, %98 : vector<1x256xf32>
    %c32_i32_31 = arith.constant 32 : i32
    %100 = arith.muli %arg0, %c32_i32_31 : i32
    %c12_i32 = arith.constant 12 : i32
    %101 = arith.addi %100, %c12_i32 : i32
    %c0_i32_32 = arith.constant 0 : i32
    %102 = arith.addi %101, %c0_i32_32 : i32
    %103 = arith.index_cast %102 : i32 to index
    %104 = memref.load %arg2[%103] : memref<64xf32, #tpu.memory_space<smem>>
    %105 = vector.broadcast %104 : f32 to vector<1x256xf32>
    %106 = arith.mulf %105, %12 : vector<1x256xf32>
    %c32_i32_33 = arith.constant 32 : i32
    %107 = arith.muli %arg0, %c32_i32_33 : i32
    %c12_i32_34 = arith.constant 12 : i32
    %108 = arith.addi %107, %c12_i32_34 : i32
    %c1_i32_35 = arith.constant 1 : i32
    %109 = arith.addi %108, %c1_i32_35 : i32
    %110 = arith.index_cast %109 : i32 to index
    %111 = memref.load %arg2[%110] : memref<64xf32, #tpu.memory_space<smem>>
    %112 = vector.broadcast %111 : f32 to vector<1x256xf32>
    %113 = arith.mulf %112, %9 : vector<1x256xf32>
    %114 = arith.addf %106, %113 : vector<1x256xf32>
    %c32_i32_36 = arith.constant 32 : i32
    %115 = arith.muli %arg0, %c32_i32_36 : i32
    %c12_i32_37 = arith.constant 12 : i32
    %116 = arith.addi %115, %c12_i32_37 : i32
    %c2_i32_38 = arith.constant 2 : i32
    %117 = arith.addi %116, %c2_i32_38 : i32
    %118 = arith.index_cast %117 : i32 to index
    %119 = memref.load %arg2[%118] : memref<64xf32, #tpu.memory_space<smem>>
    %120 = vector.broadcast %119 : f32 to vector<1x256xf32>
    %121 = arith.addf %114, %120 : vector<1x256xf32>
    %c32_i32_39 = arith.constant 32 : i32
    %122 = arith.muli %arg0, %c32_i32_39 : i32
    %c12_i32_40 = arith.constant 12 : i32
    %123 = arith.addi %122, %c12_i32_40 : i32
    %c3_i32_41 = arith.constant 3 : i32
    %124 = arith.addi %123, %c3_i32_41 : i32
    %125 = arith.index_cast %124 : i32 to index
    %126 = memref.load %arg2[%125] : memref<64xf32, #tpu.memory_space<smem>>
    %127 = vector.broadcast %126 : f32 to vector<1x256xf32>
    %128 = arith.addf %121, %127 : vector<1x256xf32>
    %129 = math.absf %128 : vector<1x256xf32>
    %cst_42 = arith.constant 9.99999993E-9 : f32
    %130 = vector.broadcast %cst_42 : f32 to vector<1x256xf32>
    %131 = arith.cmpf ogt, %129, %130 : vector<1x256xf32>
    %132 = tpu.reciprocal %128 {approx = true} : vector<1x256xf32> -> vector<1x256xf32>
    %cst_43 = arith.constant 1.000000e+00 : f32
    %133 = vector.broadcast %cst_43 : f32 to vector<1x256xf32>
    %134 = arith.select %131, %132, %133 : vector<1x256xi1>, vector<1x256xf32>
    %c0 = arith.constant 0 : index
    %c0_44 = arith.constant 0 : index
    %c0_45 = arith.constant 0 : index
    %135 = vector.load %arg3[%c0, %c0_44, %c0_45] : memref<1x1x256xf32, #tpu.memory_space<vmem>>, vector<1x1x256xf32>
    %136 = vector.shape_cast %135 : vector<1x1x256xf32> to vector<1x256xf32>
    %137 = arith.mulf %41, %134 : vector<1x256xf32>
    %138 = arith.mulf %137, %136 : vector<1x256xf32>
    %139 = arith.mulf %70, %134 : vector<1x256xf32>
    %140 = arith.mulf %139, %136 : vector<1x256xf32>
    %141 = arith.mulf %99, %134 : vector<1x256xf32>
    %142 = arith.mulf %141, %136 : vector<1x256xf32>
    %c32_i32_46 = arith.constant 32 : i32
    %143 = arith.muli %arg0, %c32_i32_46 : i32
    %c16_i32 = arith.constant 16 : i32
    %144 = arith.addi %143, %c16_i32 : i32
    %c0_i32_47 = arith.constant 0 : i32
    %145 = arith.addi %144, %c0_i32_47 : i32
    %c0_i32_48 = arith.constant 0 : i32
    %146 = arith.addi %145, %c0_i32_48 : i32
    %147 = arith.index_cast %146 : i32 to index
    %148 = memref.load %arg2[%147] : memref<64xf32, #tpu.memory_space<smem>>
    %149 = vector.broadcast %148 : f32 to vector<1x256xf32>
    %150 = arith.mulf %149, %138 : vector<1x256xf32>
    %c32_i32_49 = arith.constant 32 : i32
    %151 = arith.muli %arg0, %c32_i32_49 : i32
    %c16_i32_50 = arith.constant 16 : i32
    %152 = arith.addi %151, %c16_i32_50 : i32
    %c0_i32_51 = arith.constant 0 : i32
    %153 = arith.addi %152, %c0_i32_51 : i32
    %c1_i32_52 = arith.constant 1 : i32
    %154 = arith.addi %153, %c1_i32_52 : i32
    %155 = arith.index_cast %154 : i32 to index
    %156 = memref.load %arg2[%155] : memref<64xf32, #tpu.memory_space<smem>>
    %157 = vector.broadcast %156 : f32 to vector<1x256xf32>
    %158 = arith.mulf %157, %140 : vector<1x256xf32>
    %159 = arith.addf %150, %158 : vector<1x256xf32>
    %c32_i32_53 = arith.constant 32 : i32
    %160 = arith.muli %arg0, %c32_i32_53 : i32
    %c16_i32_54 = arith.constant 16 : i32
    %161 = arith.addi %160, %c16_i32_54 : i32
    %c0_i32_55 = arith.constant 0 : i32
    %162 = arith.addi %161, %c0_i32_55 : i32
    %c2_i32_56 = arith.constant 2 : i32
    %163 = arith.addi %162, %c2_i32_56 : i32
    %164 = arith.index_cast %163 : i32 to index
    %165 = memref.load %arg2[%164] : memref<64xf32, #tpu.memory_space<smem>>
    %166 = vector.broadcast %165 : f32 to vector<1x256xf32>
    %167 = arith.mulf %166, %142 : vector<1x256xf32>
    %168 = arith.addf %159, %167 : vector<1x256xf32>
    %c32_i32_57 = arith.constant 32 : i32
    %169 = arith.muli %arg0, %c32_i32_57 : i32
    %c16_i32_58 = arith.constant 16 : i32
    %170 = arith.addi %169, %c16_i32_58 : i32
    %c0_i32_59 = arith.constant 0 : i32
    %171 = arith.addi %170, %c0_i32_59 : i32
    %c3_i32_60 = arith.constant 3 : i32
    %172 = arith.addi %171, %c3_i32_60 : i32
    %173 = arith.index_cast %172 : i32 to index
    %174 = memref.load %arg2[%173] : memref<64xf32, #tpu.memory_space<smem>>
    %175 = vector.broadcast %174 : f32 to vector<1x256xf32>
    %176 = arith.addf %168, %175 : vector<1x256xf32>
    %c32_i32_61 = arith.constant 32 : i32
    %177 = arith.muli %arg0, %c32_i32_61 : i32
    %c16_i32_62 = arith.constant 16 : i32
    %178 = arith.addi %177, %c16_i32_62 : i32
    %c4_i32_63 = arith.constant 4 : i32
    %179 = arith.addi %178, %c4_i32_63 : i32
    %c0_i32_64 = arith.constant 0 : i32
    %180 = arith.addi %179, %c0_i32_64 : i32
    %181 = arith.index_cast %180 : i32 to index
    %182 = memref.load %arg2[%181] : memref<64xf32, #tpu.memory_space<smem>>
    %183 = vector.broadcast %182 : f32 to vector<1x256xf32>
    %184 = arith.mulf %183, %138 : vector<1x256xf32>
    %c32_i32_65 = arith.constant 32 : i32
    %185 = arith.muli %arg0, %c32_i32_65 : i32
    %c16_i32_66 = arith.constant 16 : i32
    %186 = arith.addi %185, %c16_i32_66 : i32
    %c4_i32_67 = arith.constant 4 : i32
    %187 = arith.addi %186, %c4_i32_67 : i32
    %c1_i32_68 = arith.constant 1 : i32
    %188 = arith.addi %187, %c1_i32_68 : i32
    %189 = arith.index_cast %188 : i32 to index
    %190 = memref.load %arg2[%189] : memref<64xf32, #tpu.memory_space<smem>>
    %191 = vector.broadcast %190 : f32 to vector<1x256xf32>
    %192 = arith.mulf %191, %140 : vector<1x256xf32>
    %193 = arith.addf %184, %192 : vector<1x256xf32>
    %c32_i32_69 = arith.constant 32 : i32
    %194 = arith.muli %arg0, %c32_i32_69 : i32
    %c16_i32_70 = arith.constant 16 : i32
    %195 = arith.addi %194, %c16_i32_70 : i32
    %c4_i32_71 = arith.constant 4 : i32
    %196 = arith.addi %195, %c4_i32_71 : i32
    %c2_i32_72 = arith.constant 2 : i32
    %197 = arith.addi %196, %c2_i32_72 : i32
    %198 = arith.index_cast %197 : i32 to index
    %199 = memref.load %arg2[%198] : memref<64xf32, #tpu.memory_space<smem>>
    %200 = vector.broadcast %199 : f32 to vector<1x256xf32>
    %201 = arith.mulf %200, %142 : vector<1x256xf32>
    %202 = arith.addf %193, %201 : vector<1x256xf32>
    %c32_i32_73 = arith.constant 32 : i32
    %203 = arith.muli %arg0, %c32_i32_73 : i32
    %c16_i32_74 = arith.constant 16 : i32
    %204 = arith.addi %203, %c16_i32_74 : i32
    %c4_i32_75 = arith.constant 4 : i32
    %205 = arith.addi %204, %c4_i32_75 : i32
    %c3_i32_76 = arith.constant 3 : i32
    %206 = arith.addi %205, %c3_i32_76 : i32
    %207 = arith.index_cast %206 : i32 to index
    %208 = memref.load %arg2[%207] : memref<64xf32, #tpu.memory_space<smem>>
    %209 = vector.broadcast %208 : f32 to vector<1x256xf32>
    %210 = arith.addf %202, %209 : vector<1x256xf32>
    %c32_i32_77 = arith.constant 32 : i32
    %211 = arith.muli %arg0, %c32_i32_77 : i32
    %c16_i32_78 = arith.constant 16 : i32
    %212 = arith.addi %211, %c16_i32_78 : i32
    %c8_i32_79 = arith.constant 8 : i32
    %213 = arith.addi %212, %c8_i32_79 : i32
    %c0_i32_80 = arith.constant 0 : i32
    %214 = arith.addi %213, %c0_i32_80 : i32
    %215 = arith.index_cast %214 : i32 to index
    %216 = memref.load %arg2[%215] : memref<64xf32, #tpu.memory_space<smem>>
    %217 = vector.broadcast %216 : f32 to vector<1x256xf32>
    %218 = arith.mulf %217, %138 : vector<1x256xf32>
    %c32_i32_81 = arith.constant 32 : i32
    %219 = arith.muli %arg0, %c32_i32_81 : i32
    %c16_i32_82 = arith.constant 16 : i32
    %220 = arith.addi %219, %c16_i32_82 : i32
    %c8_i32_83 = arith.constant 8 : i32
    %221 = arith.addi %220, %c8_i32_83 : i32
    %c1_i32_84 = arith.constant 1 : i32
    %222 = arith.addi %221, %c1_i32_84 : i32
    %223 = arith.index_cast %222 : i32 to index
    %224 = memref.load %arg2[%223] : memref<64xf32, #tpu.memory_space<smem>>
    %225 = vector.broadcast %224 : f32 to vector<1x256xf32>
    %226 = arith.mulf %225, %140 : vector<1x256xf32>
    %227 = arith.addf %218, %226 : vector<1x256xf32>
    %c32_i32_85 = arith.constant 32 : i32
    %228 = arith.muli %arg0, %c32_i32_85 : i32
    %c16_i32_86 = arith.constant 16 : i32
    %229 = arith.addi %228, %c16_i32_86 : i32
    %c8_i32_87 = arith.constant 8 : i32
    %230 = arith.addi %229, %c8_i32_87 : i32
    %c2_i32_88 = arith.constant 2 : i32
    %231 = arith.addi %230, %c2_i32_88 : i32
    %232 = arith.index_cast %231 : i32 to index
    %233 = memref.load %arg2[%232] : memref<64xf32, #tpu.memory_space<smem>>
    %234 = vector.broadcast %233 : f32 to vector<1x256xf32>
    %235 = arith.mulf %234, %142 : vector<1x256xf32>
    %236 = arith.addf %227, %235 : vector<1x256xf32>
    %c32_i32_89 = arith.constant 32 : i32
    %237 = arith.muli %arg0, %c32_i32_89 : i32
    %c16_i32_90 = arith.constant 16 : i32
    %238 = arith.addi %237, %c16_i32_90 : i32
    %c8_i32_91 = arith.constant 8 : i32
    %239 = arith.addi %238, %c8_i32_91 : i32
    %c3_i32_92 = arith.constant 3 : i32
    %240 = arith.addi %239, %c3_i32_92 : i32
    %241 = arith.index_cast %240 : i32 to index
    %242 = memref.load %arg2[%241] : memref<64xf32, #tpu.memory_space<smem>>
    %243 = vector.broadcast %242 : f32 to vector<1x256xf32>
    %244 = arith.addf %236, %243 : vector<1x256xf32>
    %c32_i32_93 = arith.constant 32 : i32
    %245 = arith.muli %arg0, %c32_i32_93 : i32
    %c16_i32_94 = arith.constant 16 : i32
    %246 = arith.addi %245, %c16_i32_94 : i32
    %c12_i32_95 = arith.constant 12 : i32
    %247 = arith.addi %246, %c12_i32_95 : i32
    %c0_i32_96 = arith.constant 0 : i32
    %248 = arith.addi %247, %c0_i32_96 : i32
    %249 = arith.index_cast %248 : i32 to index
    %250 = memref.load %arg2[%249] : memref<64xf32, #tpu.memory_space<smem>>
    %251 = vector.broadcast %250 : f32 to vector<1x256xf32>
    %252 = arith.mulf %251, %138 : vector<1x256xf32>
    %c32_i32_97 = arith.constant 32 : i32
    %253 = arith.muli %arg0, %c32_i32_97 : i32
    %c16_i32_98 = arith.constant 16 : i32
    %254 = arith.addi %253, %c16_i32_98 : i32
    %c12_i32_99 = arith.constant 12 : i32
    %255 = arith.addi %254, %c12_i32_99 : i32
    %c1_i32_100 = arith.constant 1 : i32
    %256 = arith.addi %255, %c1_i32_100 : i32
    %257 = arith.index_cast %256 : i32 to index
    %258 = memref.load %arg2[%257] : memref<64xf32, #tpu.memory_space<smem>>
    %259 = vector.broadcast %258 : f32 to vector<1x256xf32>
    %260 = arith.mulf %259, %140 : vector<1x256xf32>
    %261 = arith.addf %252, %260 : vector<1x256xf32>
    %c32_i32_101 = arith.constant 32 : i32
    %262 = arith.muli %arg0, %c32_i32_101 : i32
    %c16_i32_102 = arith.constant 16 : i32
    %263 = arith.addi %262, %c16_i32_102 : i32
    %c12_i32_103 = arith.constant 12 : i32
    %264 = arith.addi %263, %c12_i32_103 : i32
    %c2_i32_104 = arith.constant 2 : i32
    %265 = arith.addi %264, %c2_i32_104 : i32
    %266 = arith.index_cast %265 : i32 to index
    %267 = memref.load %arg2[%266] : memref<64xf32, #tpu.memory_space<smem>>
    %268 = vector.broadcast %267 : f32 to vector<1x256xf32>
    %269 = arith.mulf %268, %142 : vector<1x256xf32>
    %270 = arith.addf %261, %269 : vector<1x256xf32>
    %c32_i32_105 = arith.constant 32 : i32
    %271 = arith.muli %arg0, %c32_i32_105 : i32
    %c16_i32_106 = arith.constant 16 : i32
    %272 = arith.addi %271, %c16_i32_106 : i32
    %c12_i32_107 = arith.constant 12 : i32
    %273 = arith.addi %272, %c12_i32_107 : i32
    %c3_i32_108 = arith.constant 3 : i32
    %274 = arith.addi %273, %c3_i32_108 : i32
    %275 = arith.index_cast %274 : i32 to index
    %276 = memref.load %arg2[%275] : memref<64xf32, #tpu.memory_space<smem>>
    %277 = vector.broadcast %276 : f32 to vector<1x256xf32>
    %278 = arith.addf %270, %277 : vector<1x256xf32>
    %279 = math.absf %278 : vector<1x256xf32>
    %cst_109 = arith.constant 9.99999993E-9 : f32
    %280 = vector.broadcast %cst_109 : f32 to vector<1x256xf32>
    %281 = arith.cmpf ogt, %279, %280 : vector<1x256xf32>
    %cst_110 = arith.constant 9.99999996E-13 : f32
    %282 = vector.broadcast %cst_110 : f32 to vector<1x256xf32>
    %283 = arith.mulf %282, %278 : vector<1x256xf32>
    %284 = arith.addf %244, %283 : vector<1x256xf32>
    %cst_111 = arith.constant 9.99999996E-13 : f32
    %285 = vector.broadcast %cst_111 : f32 to vector<1x256xf32>
    %286 = arith.addf %244, %285 : vector<1x256xf32>
    %287 = arith.select %281, %284, %286 : vector<1x256xi1>, vector<1x256xf32>
    %288 = tpu.reciprocal %287 {approx = true} : vector<1x256xf32> -> vector<1x256xf32>
    %289 = arith.mulf %176, %288 : vector<1x256xf32>
    %290 = arith.mulf %210, %288 : vector<1x256xf32>
    %291 = math.absf %289 : vector<1x256xf32>
    %cst_112 = arith.constant 1.000000e+30 : f32
    %292 = vector.broadcast %cst_112 : f32 to vector<1x256xf32>
    %293 = arith.cmpf olt, %291, %292 : vector<1x256xf32>
    %294 = math.absf %290 : vector<1x256xf32>
    %cst_113 = arith.constant 1.000000e+30 : f32
    %295 = vector.broadcast %cst_113 : f32 to vector<1x256xf32>
    %296 = arith.cmpf olt, %294, %295 : vector<1x256xf32>
    %297 = arith.andi %293, %296 : vector<1x256xi1>
    %cst_114 = arith.constant -2.000000e+00 : f32
    %298 = vector.broadcast %cst_114 : f32 to vector<1x256xf32>
    %299 = arith.select %297, %289, %298 : vector<1x256xi1>, vector<1x256xf32>
    %cst_115 = arith.constant -2.000000e+00 : f32
    %300 = vector.broadcast %cst_115 : f32 to vector<1x256xf32>
    %301 = arith.select %297, %290, %300 : vector<1x256xi1>, vector<1x256xf32>
    %302 = math.floor %299 : vector<1x256xf32>
    %303 = math.floor %301 : vector<1x256xf32>
    %cst_116 = arith.constant 1.000000e+00 : f32
    %304 = vector.broadcast %cst_116 : f32 to vector<1x256xf32>
    %305 = arith.addf %302, %304 : vector<1x256xf32>
    %cst_117 = arith.constant 1.000000e+00 : f32
    %306 = vector.broadcast %cst_117 : f32 to vector<1x256xf32>
    %307 = arith.addf %303, %306 : vector<1x256xf32>
    %308 = arith.subf %299, %302 : vector<1x256xf32>
    %cst_118 = arith.constant 1.000000e+00 : f32
    %309 = vector.broadcast %cst_118 : f32 to vector<1x256xf32>
    %310 = arith.subf %309, %308 : vector<1x256xf32>
    %311 = arith.subf %301, %303 : vector<1x256xf32>
    %cst_119 = arith.constant 1.000000e+00 : f32
    %312 = vector.broadcast %cst_119 : f32 to vector<1x256xf32>
    %313 = arith.subf %312, %311 : vector<1x256xf32>
    %cst_120 = arith.constant 0.000000e+00 : f32
    %314 = vector.broadcast %cst_120 : f32 to vector<1x256xf32>
    %315 = arith.cmpf oge, %302, %314 : vector<1x256xf32>
    %cst_121 = arith.constant 1.500000e+01 : f32
    %316 = vector.broadcast %cst_121 : f32 to vector<1x256xf32>
    %317 = arith.cmpf ole, %302, %316 : vector<1x256xf32>
    %318 = arith.andi %315, %317 : vector<1x256xi1>
    %cst_122 = arith.constant 0.000000e+00 : f32
    %319 = vector.broadcast %cst_122 : f32 to vector<1x256xf32>
    %320 = arith.select %318, %310, %319 : vector<1x256xi1>, vector<1x256xf32>
    %cst_123 = arith.constant 0.000000e+00 : f32
    %321 = vector.broadcast %cst_123 : f32 to vector<1x256xf32>
    %322 = arith.cmpf oge, %305, %321 : vector<1x256xf32>
    %cst_124 = arith.constant 1.500000e+01 : f32
    %323 = vector.broadcast %cst_124 : f32 to vector<1x256xf32>
    %324 = arith.cmpf ole, %305, %323 : vector<1x256xf32>
    %325 = arith.andi %322, %324 : vector<1x256xi1>
    %cst_125 = arith.constant 0.000000e+00 : f32
    %326 = vector.broadcast %cst_125 : f32 to vector<1x256xf32>
    %327 = arith.select %325, %308, %326 : vector<1x256xi1>, vector<1x256xf32>
    %cst_126 = arith.constant 0.000000e+00 : f32
    %328 = vector.broadcast %cst_126 : f32 to vector<1x256xf32>
    %329 = arith.cmpf oge, %303, %328 : vector<1x256xf32>
    %cst_127 = arith.constant 1.500000e+01 : f32
    %330 = vector.broadcast %cst_127 : f32 to vector<1x256xf32>
    %331 = arith.cmpf ole, %303, %330 : vector<1x256xf32>
    %332 = arith.andi %329, %331 : vector<1x256xi1>
    %cst_128 = arith.constant 0.000000e+00 : f32
    %333 = vector.broadcast %cst_128 : f32 to vector<1x256xf32>
    %334 = arith.select %332, %313, %333 : vector<1x256xi1>, vector<1x256xf32>
    %cst_129 = arith.constant 0.000000e+00 : f32
    %335 = vector.broadcast %cst_129 : f32 to vector<1x256xf32>
    %336 = arith.cmpf oge, %307, %335 : vector<1x256xf32>
    %cst_130 = arith.constant 1.500000e+01 : f32
    %337 = vector.broadcast %cst_130 : f32 to vector<1x256xf32>
    %338 = arith.cmpf ole, %307, %337 : vector<1x256xf32>
    %339 = arith.andi %336, %338 : vector<1x256xi1>
    %cst_131 = arith.constant 0.000000e+00 : f32
    %340 = vector.broadcast %cst_131 : f32 to vector<1x256xf32>
    %341 = arith.select %339, %311, %340 : vector<1x256xi1>, vector<1x256xf32>
    %cst_132 = arith.constant 0.000000e+00 : f32
    %cst_133 = arith.constant 1.500000e+01 : f32
    %342 = vector.broadcast %cst_132 : f32 to vector<1x256xf32>
    %343 = arith.maximumf %342, %302 : vector<1x256xf32>
    %344 = vector.broadcast %cst_133 : f32 to vector<1x256xf32>
    %345 = arith.minimumf %344, %343 : vector<1x256xf32>
    %346 = arith.fptosi %345 : vector<1x256xf32> to vector<1x256xi32>
    %cst_134 = arith.constant 0.000000e+00 : f32
    %cst_135 = arith.constant 1.500000e+01 : f32
    %347 = vector.broadcast %cst_134 : f32 to vector<1x256xf32>
    %348 = arith.maximumf %347, %305 : vector<1x256xf32>
    %349 = vector.broadcast %cst_135 : f32 to vector<1x256xf32>
    %350 = arith.minimumf %349, %348 : vector<1x256xf32>
    %351 = arith.fptosi %350 : vector<1x256xf32> to vector<1x256xi32>
    %cst_136 = arith.constant 0.000000e+00 : f32
    %cst_137 = arith.constant 1.500000e+01 : f32
    %352 = vector.broadcast %cst_136 : f32 to vector<1x256xf32>
    %353 = arith.maximumf %352, %303 : vector<1x256xf32>
    %354 = vector.broadcast %cst_137 : f32 to vector<1x256xf32>
    %355 = arith.minimumf %354, %353 : vector<1x256xf32>
    %356 = arith.fptosi %355 : vector<1x256xf32> to vector<1x256xi32>
    %cst_138 = arith.constant 0.000000e+00 : f32
    %cst_139 = arith.constant 1.500000e+01 : f32
    %357 = vector.broadcast %cst_138 : f32 to vector<1x256xf32>
    %358 = arith.maximumf %357, %307 : vector<1x256xf32>
    %359 = vector.broadcast %cst_139 : f32 to vector<1x256xf32>
    %360 = arith.minimumf %359, %358 : vector<1x256xf32>
    %361 = arith.fptosi %360 : vector<1x256xf32> to vector<1x256xi32>
    %362 = tpu.iota {dimensions = array<i32: 0>} : vector<16x256xi32>
    %363 = vector.broadcast %346 : vector<1x256xi32> to vector<16x256xi32>
    %364 = arith.cmpi eq, %362, %363 : vector<16x256xi32>
    %cst_140 = arith.constant 0.000000e+00 : f32
    %365 = vector.shape_cast %320 : vector<1x256xf32> to vector<1x256xf32>
    %366 = vector.broadcast %365 : vector<1x256xf32> to vector<16x256xf32>
    %367 = vector.broadcast %cst_140 : f32 to vector<16x256xf32>
    %368 = arith.select %364, %366, %367 : vector<16x256xi1>, vector<16x256xf32>
    %369 = vector.broadcast %351 : vector<1x256xi32> to vector<16x256xi32>
    %370 = arith.cmpi eq, %362, %369 : vector<16x256xi32>
    %cst_141 = arith.constant 0.000000e+00 : f32
    %371 = vector.shape_cast %327 : vector<1x256xf32> to vector<1x256xf32>
    %372 = vector.broadcast %371 : vector<1x256xf32> to vector<16x256xf32>
    %373 = vector.broadcast %cst_141 : f32 to vector<16x256xf32>
    %374 = arith.select %370, %372, %373 : vector<16x256xi1>, vector<16x256xf32>
    %375 = arith.addf %368, %374 : vector<16x256xf32>
    %376 = tpu.iota {dimensions = array<i32: 0>} : vector<16x256xi32>
    %377 = vector.broadcast %356 : vector<1x256xi32> to vector<16x256xi32>
    %378 = arith.cmpi eq, %376, %377 : vector<16x256xi32>
    %cst_142 = arith.constant 0.000000e+00 : f32
    %379 = vector.shape_cast %334 : vector<1x256xf32> to vector<1x256xf32>
    %380 = vector.broadcast %379 : vector<1x256xf32> to vector<16x256xf32>
    %381 = vector.broadcast %cst_142 : f32 to vector<16x256xf32>
    %382 = arith.select %378, %380, %381 : vector<16x256xi1>, vector<16x256xf32>
    %383 = vector.broadcast %361 : vector<1x256xi32> to vector<16x256xi32>
    %384 = arith.cmpi eq, %376, %383 : vector<16x256xi32>
    %cst_143 = arith.constant 0.000000e+00 : f32
    %385 = vector.shape_cast %341 : vector<1x256xf32> to vector<1x256xf32>
    %386 = vector.broadcast %385 : vector<1x256xf32> to vector<16x256xf32>
    %387 = vector.broadcast %cst_143 : f32 to vector<16x256xf32>
    %388 = arith.select %384, %386, %387 : vector<16x256xi1>, vector<16x256xf32>
    %389 = arith.addf %382, %388 : vector<16x256xf32>
    %c0_144 = arith.constant 0 : index
    %c0_145 = arith.constant 0 : index
    %c0_146 = arith.constant 0 : index
    %390 = vector.load %arg5[%c0_144, %c0_145, %c0_146] : memref<1x48x16xbf16, #tpu.memory_space<vmem>>, vector<1x48x16xbf16>
    %391 = vector.shape_cast %390 : vector<1x48x16xbf16> to vector<48x16xbf16>
    %392 = arith.truncf %375 : vector<16x256xf32> to vector<16x256xbf16>
    %cst_147 = arith.constant dense<0.000000e+00> : vector<48x256xf32>
    %393 = tpu.matmul %391, %392, %cst_147 {dimension_numbers = #tpu.dot_dimension_numbers<[1], [0], [0], [1], [0, 0, 1, 1], [], []>} : vector<48x16xbf16>, vector<16x256xbf16>, vector<48x256xf32> -> vector<48x256xf32>
    %c0_148 = arith.constant 0 : index
    %c0_149 = arith.constant 0 : index
    %c0_150 = arith.constant 0 : index
    %394 = vector.load %arg4[%c0_148, %c0_149, %c0_150] : memref<1x3x256xf32, #tpu.memory_space<vmem>>, vector<1x3x256xf32>
    %395 = vector.shape_cast %394 : vector<1x3x256xf32> to vector<3x256xf32>
    %cst_151 = arith.constant 0.000000e+00 : f32
    %396 = vector.broadcast %cst_151 : f32 to vector<1x256xf32>
    %cst_152 = arith.constant 0.000000e+00 : f32
    %397 = vector.broadcast %cst_152 : f32 to vector<1x256xf32>
    %398 = vector.extract_strided_slice %393 {offsets = [0, 0], sizes = [16, 256], strides = [1, 1]} : vector<48x256xf32> to vector<16x256xf32>
    %399 = arith.mulf %398, %389 : vector<16x256xf32>
    %cst_153 = arith.constant dense<0.000000e+00> : vector<256xf32>
    %400 = vector.multi_reduction <add>, %399, %cst_153 [0] : vector<16x256xf32> to vector<256xf32>
    %401 = vector.shape_cast %400 : vector<256xf32> to vector<1x256xf32>
    %402 = vector.extract_strided_slice %395 {offsets = [0, 0], sizes = [1, 256], strides = [1, 1]} : vector<3x256xf32> to vector<1x256xf32>
    %403 = arith.subf %402, %401 : vector<1x256xf32>
    %404 = math.absf %403 : vector<1x256xf32>
    %405 = arith.addf %396, %404 : vector<1x256xf32>
    %406 = arith.addf %397, %401 : vector<1x256xf32>
    %407 = vector.extract_strided_slice %393 {offsets = [16, 0], sizes = [16, 256], strides = [1, 1]} : vector<48x256xf32> to vector<16x256xf32>
    %408 = arith.mulf %407, %389 : vector<16x256xf32>
    %cst_154 = arith.constant dense<0.000000e+00> : vector<256xf32>
    %409 = vector.multi_reduction <add>, %408, %cst_154 [0] : vector<16x256xf32> to vector<256xf32>
    %410 = vector.shape_cast %409 : vector<256xf32> to vector<1x256xf32>
    %411 = vector.extract_strided_slice %395 {offsets = [1, 0], sizes = [1, 256], strides = [1, 1]} : vector<3x256xf32> to vector<1x256xf32>
    %412 = arith.subf %411, %410 : vector<1x256xf32>
    %413 = math.absf %412 : vector<1x256xf32>
    %414 = arith.addf %405, %413 : vector<1x256xf32>
    %415 = arith.addf %406, %410 : vector<1x256xf32>
    %416 = vector.extract_strided_slice %393 {offsets = [32, 0], sizes = [16, 256], strides = [1, 1]} : vector<48x256xf32> to vector<16x256xf32>
    %417 = arith.mulf %416, %389 : vector<16x256xf32>
    %cst_155 = arith.constant dense<0.000000e+00> : vector<256xf32>
    %418 = vector.multi_reduction <add>, %417, %cst_155 [0] : vector<16x256xf32> to vector<256xf32>
    %419 = vector.shape_cast %418 : vector<256xf32> to vector<1x256xf32>
    %420 = vector.extract_strided_slice %395 {offsets = [2, 0], sizes = [1, 256], strides = [1, 1]} : vector<3x256xf32> to vector<1x256xf32>
    %421 = arith.subf %420, %419 : vector<1x256xf32>
    %422 = math.absf %421 : vector<1x256xf32>
    %423 = arith.addf %414, %422 : vector<1x256xf32>
    %424 = arith.addf %415, %419 : vector<1x256xf32>
    %cst_156 = arith.constant dense<0.000000e+00> : vector<256xf32>
    %425 = vector.multi_reduction <add>, %395, %cst_156 [0] : vector<3x256xf32> to vector<256xf32>
    %426 = vector.shape_cast %425 : vector<256xf32> to vector<1x256xf32>
    %cst_157 = arith.constant 0.000000e+00 : f32
    %427 = vector.broadcast %cst_157 : f32 to vector<1x256xf32>
    %428 = arith.cmpf ogt, %424, %427 : vector<1x256xf32>
    %cst_158 = arith.constant 0.000000e+00 : f32
    %429 = vector.broadcast %cst_158 : f32 to vector<1x256xf32>
    %430 = arith.cmpf ogt, %426, %429 : vector<1x256xf32>
    %431 = arith.andi %428, %430 : vector<1x256xi1>
    %432 = arith.extui %431 : vector<1x256xi1> to vector<1x256xi32>
    %433 = arith.sitofp %432 : vector<1x256xi32> to vector<1x256xf32>
    %434 = arith.mulf %423, %433 : vector<1x256xf32>
    %cst_159 = arith.constant dense<0.000000e+00> : vector<1xf32>
    %435 = vector.multi_reduction <add>, %434, %cst_159 [1] : vector<1x256xf32> to vector<1xf32>
    %436 = vector.shape_cast %435 : vector<1xf32> to vector<1x1xf32>
    %cst_160 = arith.constant dense<0.000000e+00> : vector<1xf32>
    %437 = vector.multi_reduction <add>, %433, %cst_160 [1] : vector<1x256xf32> to vector<1xf32>
    %438 = vector.shape_cast %437 : vector<1xf32> to vector<1x1xf32>
    %439 = tpu.iota {dimensions = array<i32: 1>} : vector<1x128xi32>
    %c0_i32_161 = arith.constant 0 : i32
    %440 = vector.broadcast %c0_i32_161 : i32 to vector<1x128xi32>
    %441 = arith.cmpi eq, %439, %440 : vector<1x128xi32>
    %c1_i32_162 = arith.constant 1 : i32
    %442 = vector.broadcast %c1_i32_162 : i32 to vector<1x128xi32>
    %443 = arith.cmpi eq, %439, %442 : vector<1x128xi32>
    %cst_163 = arith.constant 0.000000e+00 : f32
    %444 = vector.shape_cast %438 : vector<1x1xf32> to vector<1x1xf32>
    %445 = vector.broadcast %444 : vector<1x1xf32> to vector<1x128xf32>
    %446 = vector.broadcast %cst_163 : f32 to vector<1x128xf32>
    %447 = arith.select %443, %445, %446 : vector<1x128xi1>, vector<1x128xf32>
    %448 = vector.shape_cast %436 : vector<1x1xf32> to vector<1x1xf32>
    %449 = vector.broadcast %448 : vector<1x1xf32> to vector<1x128xf32>
    %450 = arith.select %441, %449, %447 : vector<1x128xi1>, vector<1x128xf32>
    %c0_164 = arith.constant 0 : index
    %c0_165 = arith.constant 0 : index
    %c0_166 = arith.constant 0 : index
    %c0_167 = arith.constant 0 : index
    %451 = vector.load %arg6[%c0_164, %c0_165, %c0_166, %c0_167] : memref<1x1x1x128xf32, #tpu.memory_space<vmem>>, vector<1x1x1x128xf32>
    %452 = vector.shape_cast %451 : vector<1x1x1x128xf32> to vector<1x128xf32>
    %453 = vector.shape_cast %450 : vector<1x128xf32> to vector<1x1x1x128xf32>
    tpu.vector_store %arg6[%c0_164, %c0_165, %c0_166, %c0_167], %453 {strides = array<i32>} : memref<1x1x1x128xf32, #tpu.memory_space<vmem>>, vector<1x1x1x128xf32>,
    return
  }
  func.func @transform_0(%arg0: i32, %arg1: i32) -> i32 {
    %c0_i32 = arith.constant 0 : i32
    %c0_i32_0 = arith.constant 0 : i32
    return %c0_i32 : i32
  }
  func.func @transform_1(%arg0: i32, %arg1: i32) -> (i32, i32, i32) {
    %c0_i32 = arith.constant 0 : i32
    %c0_i32_0 = arith.constant 0 : i32
    return %arg0, %c0_i32, %arg1 : i32, i32, i32
  }
  func.func @transform_2(%arg0: i32, %arg1: i32) -> (i32, i32, i32) {
    %c0_i32 = arith.constant 0 : i32
    %c0_i32_0 = arith.constant 0 : i32
    return %arg0, %c0_i32, %arg1 : i32, i32, i32
  }
  func.func @transform_3(%arg0: i32, %arg1: i32) -> (i32, i32, i32) {
    %c0_i32 = arith.constant 0 : i32
    %c0_i32_0 = arith.constant 0 : i32
    %c0_i32_1 = arith.constant 0 : i32
    return %arg0, %c0_i32, %c0_i32_0 : i32, i32, i32
  }
  func.func @transform_4(%arg0: i32, %arg1: i32) -> (i32, i32, i32, i32) {
    %c0_i32 = arith.constant 0 : i32
    %c0_i32_0 = arith.constant 0 : i32
    %c0_i32_1 = arith.constant 0 : i32
    return %arg0, %arg1, %c0_i32, %c0_i32_0 : i32, i32, i32, i32
  }
}

</mosaic_0001>

<llo_original>
// kernel: tpu_custom_call.1
$region0: #{tpu_custom_call.1}
  #allocation0 [shape = 'u32[]', space=smem, size = 0x4, offset = 0x4, fixed_abs, tag = 'smem constant byte address 0x4 - core index']
  #allocation1 [shape = 'u32[72,128]{1,0:T(1,128)}', space=vmem, size = 0x9000, scoped, tag = 'internal scratch']
  %s0 = inlined_call_operand.vmem [shape: f32[64], index: 0, kind: input, shape index: {}]
  %s1 = inlined_call_operand.vmem [shape: f32[2,1,256], index: 1, kind: input, shape index: {}]
  %s2 = inlined_call_operand.vmem [shape: f32[2,3,256], index: 2, kind: input, shape index: {}]
  %s3 = inlined_call_operand.vmem [shape: bf16[2,48,16], index: 3, kind: input, shape index: {}]
  %s4 = inlined_call_operand.hbm [shape: f32[2,1,1,128], index: 4, kind: output, shape index: {}]
  %s5 = sld [smem:[#allocation0]]
  $region53: #{tpu_custom_call.1} parent=0
    _
  %s7 = ssub.s32 1, %s5
  %s8 = scalar_select 0, %s7, %s5
  $region1: #{tpu_custom_call.1} parent=0
    #allocation2 [shape = 'u8[512]{0}', space=smem, size = 0x200, scoped, tag = 'input window, operand 0, single buffered']
    #allocation3 [shape = 's32[2]{0}', space=sflag, size = 0x8, scoped, tag = 'scoped memory for tpu_custom_call.1']
    #allocation4 [shape = 's32[2]{0}', space=sflag, size = 0x8, scoped, tag = 'scoped memory for tpu_custom_call.1']
    #allocation5 [shape = 'u8[1024]{0}', space=vmem, size = 0x400, scoped, tag = 'output window, operand 0']
    %9 = vsyncpa [#allocation4], 0
    %10 = vsyncpa [#allocation3], 0
    %s11 = scalar_lea.sflag [#allocation3], 1
    %12 = vsyncpa %s11, 0
    loop: start=0, step=1, limit=4
    $region2: #{tpu_custom_call.1} parent=1 // loop_pre_header
      _
    $region3: #{tpu_custom_call.1} parent=1 // loop_header
      %s14 = sphi 0, %s18
      %p15 = scmp.ge.s32.totalorder %s14, 4
      %s21 = sphi 0, %s33
      %s22 = sphi 0, %s29
      %s23 = sphi 0, %s21
      %s24 = sphi 0, %s22
      %s25 = sphi 0, %s23
      %s26 = sphi 0, %s24
      %s34 = sphi 0, %s34
      %s36 = sphi 0, %s34
      %s37 = sphi 0, %s36
      %s51 = sphi 0, %s37
      %s59 = sphi 0, %s61
      %s62 = sphi 0, %s59
      %s63 = sphi 0, %s62
      %s79 = sphi 0, %s63
      %s87 = sphi 0, %s89
      %s90 = sphi 0, %s87
      %s91 = sphi 0, %s90
      %s107 = sphi 0, %s91
      %s113 = sphi 0, %s115
      %s116 = sphi 0, %s113
      %s117 = sphi 0, %s116
      %s133 = sphi 0, %s117
      %s141 = sphi 0, %s143
      %s144 = sphi 0, %s141
      %s145 = sphi 0, %s144
      %s161 = sphi 0, %s145
    $region4: #{tpu_custom_call.1} parent=1 // loop_header_branch
      %17 = sbr.rel (%p15) target = $region8
    $region5: #{tpu_custom_call.1} parent=1 // loop_body
      %s19 = ssub.s32 %s14, 1
      %s20 = ssub.s32 %s14, 2
      %s27 = sadd.s32 1, %s22
      %p28 = scmp.ge.s32.totalorder %s27, 1
      %s29 = scalar_select %p28, 0, %s27
      %s30 = sadd.s32 1, %s21
      %s31 = scalar_select %p28, %s30, %s21
      %p32 = scmp.ge.s32.totalorder %s31, 2
      %s33 = scalar_select %p32, 0, %s31
      %s35 = sadd.s32 %s34, 1
      %p38 = scmp.eq.s32.totalorder %s14, 1
      %p39 = scmp.ne.s32.totalorder %s34, %s36
      %p40 = scmp.eq.s32.totalorder %s14, 0
      %p41 = por %p39, %p40
      %p42 = scmp.ne.s32.totalorder %s34, %s36
      %p43 = scmp.eq.s32.totalorder %s19, 1
      %p44 = por %p42, %p43
      %p45 = scmp.ne.s32.totalorder %s36, %s37
      %p46 = scmp.eq.s32.totalorder %s19, 0
      %p47 = por %p45, %p46
      %p48 = scmp.ne.s32.totalorder %s36, %s37
      %p49 = scmp.eq.s32.totalorder %s20, 1
      %p50 = por %p48, %p49
      %p52 = scmp.ne.s32.totalorder %s37, %s51
      %p53 = scmp.eq.s32.totalorder %s20, 0
      %p54 = por %p52, %p53
      %s55 = ssub.s32 %s21, %s33
      %s56 = ssub.s32 %s22, %s29
      %s57 = sor.u32 %s55, %s56
      %p58 = scmp.eq.s32.totalorder %s57, 0
      %s60 = sadd.s32 %s59, 1
      %s61 = scalar_select %p58, %s59, %s60
      %p64 = pneg %p58
      %p65 = scmp.eq.s32.totalorder %s14, 1
      %p66 = por %p64, %p65
      %p67 = scmp.ne.s32.totalorder %s59, %s62
      %p68 = scmp.eq.s32.totalorder %s14, 0
      %p69 = por %p67, %p68
      %p70 = scmp.ne.s32.totalorder %s59, %s62
      %p71 = scmp.eq.s32.totalorder %s19, 1
      %p72 = por %p70, %p71
      %p73 = scmp.ne.s32.totalorder %s62, %s63
      %p74 = scmp.eq.s32.totalorder %s19, 0
      %p75 = por %p73, %p74
      %p76 = scmp.ne.s32.totalorder %s62, %s63
      %p77 = scmp.eq.s32.totalorder %s20, 1
      %p78 = por %p76, %p77
      %p80 = scmp.ne.s32.totalorder %s63, %s79
      %p81 = scmp.eq.s32.totalorder %s20, 0
      %p82 = por %p80, %p81
      %s83 = ssub.s32 %s21, %s33
      %s84 = ssub.s32 %s22, %s29
      %s85 = sor.u32 %s83, %s84
      %p86 = scmp.eq.s32.totalorder %s85, 0
      %s88 = sadd.s32 %s87, 1
      %s89 = scalar_select %p86, %s87, %s88
      %p92 = pneg %p86
      %p93 = scmp.eq.s32.totalorder %s14, 1
      %p94 = por %p92, %p93
      %p95 = scmp.ne.s32.totalorder %s87, %s90
      %p96 = scmp.eq.s32.totalorder %s14, 0
      %p97 = por %p95, %p96
      %p98 = scmp.ne.s32.totalorder %s87, %s90
      %p99 = scmp.eq.s32.totalorder %s19, 1
      %p100 = por %p98, %p99
      %p101 = scmp.ne.s32.totalorder %s90, %s91
      %p102 = scmp.eq.s32.totalorder %s19, 0
      %p103 = por %p101, %p102
      %p104 = scmp.ne.s32.totalorder %s90, %s91
      %p105 = scmp.eq.s32.totalorder %s20, 1
      %p106 = por %p104, %p105
      %p108 = scmp.ne.s32.totalorder %s91, %s107
      %p109 = scmp.eq.s32.totalorder %s20, 0
      %p110 = por %p108, %p109
      %s111 = ssub.s32 %s21, %s33
      %p112 = scmp.eq.s32.totalorder %s111, 0
      %s114 = sadd.s32 %s113, 1
      %s115 = scalar_select %p112, %s113, %s114
      %p118 = pneg %p112
      %p119 = scmp.eq.s32.totalorder %s14, 1
      %p120 = por %p118, %p119
      %p121 = scmp.ne.s32.totalorder %s113, %s116
      %p122 = scmp.eq.s32.totalorder %s14, 0
      %p123 = por %p121, %p122
      %p124 = scmp.ne.s32.totalorder %s113, %s116
      %p125 = scmp.eq.s32.totalorder %s19, 1
      %p126 = por %p124, %p125
      %p127 = scmp.ne.s32.totalorder %s116, %s117
      %p128 = scmp.eq.s32.totalorder %s19, 0
      %p129 = por %p127, %p128
      %p130 = scmp.ne.s32.totalorder %s116, %s117
      %p131 = scmp.eq.s32.totalorder %s20, 1
      %p132 = por %p130, %p131
      %p134 = scmp.ne.s32.totalorder %s117, %s133
      %p135 = scmp.eq.s32.totalorder %s20, 0
      %p136 = por %p134, %p135
      %s137 = ssub.s32 %s21, %s33
      %s138 = ssub.s32 %s22, %s29
      %s139 = sor.u32 %s137, %s138
      %p140 = scmp.eq.s32.totalorder %s139, 0
      %s142 = sadd.s32 %s141, 1
      %s143 = scalar_select %p140, %s141, %s142
      %p146 = pneg %p140
      %p147 = scmp.eq.s32.totalorder %s14, 1
      %p148 = por %p146, %p147
      %p149 = scmp.ne.s32.totalorder %s141, %s144
      %p150 = scmp.eq.s32.totalorder %s14, 0
      %p151 = por %p149, %p150
      %p152 = scmp.ne.s32.totalorder %s141, %s144
      %p153 = scmp.eq.s32.totalorder %s19, 1
      %p154 = por %p152, %p153
      %p155 = scmp.ne.s32.totalorder %s144, %s145
      %p156 = scmp.eq.s32.totalorder %s19, 0
      %p157 = por %p155, %p156
      %p158 = scmp.ne.s32.totalorder %s144, %s145
      %p159 = scmp.eq.s32.totalorder %s20, 1
      %p160 = por %p158, %p159
      %p162 = scmp.ne.s32.totalorder %s145, %s161
      %p163 = scmp.eq.s32.totalorder %s20, 0
      %p164 = por %p162, %p163
      %p165 = scmp.le.s32.totalorder 1, %s14
      %p166 = scmp.lt.s32.totalorder %s14, 3
      %p167 = pnand %p165, %p166
      %p168 = pneg %p167
      // Predicated region
      $region9: #{tpu_custom_call.1} parent=5 // pred_check
        _
      $region10: #{tpu_custom_call.1} parent=5 // pred_check_branch
        %170 = sbr.rel (%p167) target = $region12
      $region11: #{tpu_custom_call.1} parent=5 // pred_region
        %s171 = ssub.s32 %s14, 1
        // Predicated region
        $region13: #{tpu_custom_call.1} parent=11 // pred_check
          %p172 = pneg %p47
        $region14: #{tpu_custom_call.1} parent=11 // pred_check_branch
          %174 = sbr.rel (%p172) target = $region16
        $region15: #{tpu_custom_call.1} parent=11 // pred_region
          %176 = vsyncadd [#allocation4], 0
          %s178 = sshll.u32 %s0, 4
          %s179 = int_to_ptr.vmem [resolvable:$true] %s178
          %181 = dma.vmem_to_smem %s179, 16, [#allocation2], [#allocation4]
        $region16: #{tpu_custom_call.1} parent=11 // pred_fallthru
          _
      $region12: #{tpu_custom_call.1} parent=5 // pred_fallthru
        _
      %p182 = scmp.lt.s32.totalorder %s14, 2
      // Predicated region
      $region17: #{tpu_custom_call.1} parent=5 // pred_check
        %p183 = pneg %p182
      $region18: #{tpu_custom_call.1} parent=5 // pred_check_branch
        %185 = sbr.rel (%p183) target = $region20
      $region19: #{tpu_custom_call.1} parent=5 // pred_region
        // Predicated region
        $region21: #{tpu_custom_call.1} parent=19 // pred_check
          %p186 = pneg %p69
        $region22: #{tpu_custom_call.1} parent=19 // pred_check_branch
          %188 = sbr.rel (%p186) target = $region24
        $region23: #{tpu_custom_call.1} parent=19 // pred_region
          %s189 = smul.u32 2, %s22
          %p190 = scmp.lt.s32.totalorder %s21, 1
          %s191 = scalar_select %p190, %s21, 1
          %p192 = scmp.lt.s32.totalorder %s189, 1
          %s193 = scalar_select %p192, %s189, 1
          %s194 = smul.addr %s191, 2
          %s195 = sadd.s32 %s193, %s194
          %s196 = scalar_lea.vmem %s1, %s195
          %s197 = smul.u32 2, %s22
        $region24: #{tpu_custom_call.1} parent=19 // pred_fallthru
          _
        // Predicated region
        $region25: #{tpu_custom_call.1} parent=19 // pred_check
          %p198 = pneg %p97
        $region26: #{tpu_custom_call.1} parent=19 // pred_check_branch
          %200 = sbr.rel (%p198) target = $region28
        $region27: #{tpu_custom_call.1} parent=19 // pred_region
          %s201 = smul.u32 2, %s22
          %p202 = scmp.lt.s32.totalorder %s21, 1
          %s203 = scalar_select %p202, %s21, 1
          %p204 = scmp.lt.s32.totalorder %s201, 1
          %s205 = scalar_select %p204, %s201, 1
          %s206 = smul.addr %s203, 2
          %s207 = sadd.s32 %s205, %s206
          %s208 = smul.addr %s207, 4
          %s209 = scalar_lea.vmem %s2, %s208
          %s210 = smul.u32 2, %s22
        $region28: #{tpu_custom_call.1} parent=19 // pred_fallthru
          _
        // Predicated region
        $region29: #{tpu_custom_call.1} parent=19 // pred_check
          %p211 = pneg %p123
        $region30: #{tpu_custom_call.1} parent=19 // pred_check_branch
          %213 = sbr.rel (%p211) target = $region32
        $region31: #{tpu_custom_call.1} parent=19 // pred_region
          %p214 = scmp.lt.s32.totalorder %s21, 1
          %s215 = scalar_select %p214, %s21, 1
          %s216 = smul.addr %s215, 6
          %s217 = smul.addr %s216, 4
          %s218 = scalar_lea.vmem %s3, %s217
        $region32: #{tpu_custom_call.1} parent=19 // pred_fallthru
          _
      $region20: #{tpu_custom_call.1} parent=5 // pred_fallthru
        _
      %p219 = scmp.le.s32.totalorder 1, %s14
      %p220 = scmp.lt.s32.totalorder %s14, 3
      %p221 = pnand %p219, %p220
      %p222 = pneg %p221
      // Predicated region
      $region33: #{tpu_custom_call.1} parent=5 // pred_check
        _
      $region34: #{tpu_custom_call.1} parent=5 // pred_check_branch
        %224 = sbr.rel (%p221) target = $region36
      $region35: #{tpu_custom_call.1} parent=5 // pred_region
        %s225 = ssub.s32 %s14, 1
        // Predicated region
        $region37: #{tpu_custom_call.1} parent=35 // pred_check
          %p226 = pneg %p47
        $region38: #{tpu_custom_call.1} parent=35 // pred_check_branch
          %228 = sbr.rel (%p226) target = $region40
        $region39: #{tpu_custom_call.1} parent=35 // pred_region
          %230 = dma.done [#allocation4], 16
        $region40: #{tpu_custom_call.1} parent=35 // pred_fallthru
          _
        %231 = sfence
        %p232 = pneg %p47
        %p233 = pneg %p44
        %s234 = smul.u32 2, %s24
        %p235 = scmp.lt.s32.totalorder %s23, 1
        %s236 = scalar_select %p235, %s23, 1
        %p237 = scmp.lt.s32.totalorder %s234, 1
        %s238 = scalar_select %p237, %s234, 1
        %s239 = smul.addr %s236, 2
        %s240 = sadd.s32 %s238, %s239
        %s241 = scalar_lea.vmem %s1, %s240
        %p242 = pneg %p75
        %p243 = pneg %p72
        %s244 = smul.u32 2, %s24
        %p245 = scmp.lt.s32.totalorder %s23, 1
        %s246 = scalar_select %p245, %s23, 1
        %p247 = scmp.lt.s32.totalorder %s244, 1
        %s248 = scalar_select %p247, %s244, 1
        %s249 = smul.addr %s246, 2
        %s250 = sadd.s32 %s248, %s249
        %s251 = smul.addr %s250, 4
        %s252 = scalar_lea.vmem %s2, %s251
        %p253 = pneg %p103
        %p254 = pneg %p100
        %p255 = scmp.lt.s32.totalorder %s23, 1
        %s256 = scalar_select %p255, %s23, 1
        %s257 = smul.addr %s256, 6
        %s258 = smul.addr %s257, 4
        %s259 = scalar_lea.vmem %s3, %s258
        %p260 = pneg %p129
        %p261 = pneg %p126
        %p262 = pneg %p157
        %p263 = pneg %p154
        %s264 = sand.u32 %s144, 1
        %s265 = scalar_lea.sflag [#allocation3], %s264
        %s266 = sand.u32 %s144, 1
        %s267 = scalar_lea.vmem [#allocation5], %s266
        %s268 = smul.u32 2, %s24
        %p269 = scmp.lt.s32.totalorder %s23, 1
        %s270 = scalar_select %p269, %s23, 1
        %p271 = scmp.lt.s32.totalorder %s268, 1
        %s272 = scalar_select %p271, %s268, 1
        %s273 = smul.addr %s270, 2
        %s274 = sadd.s32 %s272, %s273
        %s275 = scalar_lea.vmem %s1, %s274
        %s276 = smul.u32 2, %s24
        %s277 = smul.u32 2, %s24
        %p278 = scmp.lt.s32.totalorder %s23, 1
        %s279 = scalar_select %p278, %s23, 1
        %p280 = scmp.lt.s32.totalorder %s277, 1
        %s281 = scalar_select %p280, %s277, 1
        %s282 = smul.addr %s279, 2
        %s283 = sadd.s32 %s281, %s282
        %s284 = smul.addr %s283, 4
        %s285 = scalar_lea.vmem %s2, %s284
        %s286 = smul.u32 2, %s24
        %p287 = scmp.lt.s32.totalorder %s23, 1
        %s288 = scalar_select %p287, %s23, 1
        %s289 = smul.addr %s288, 6
        %s290 = smul.addr %s289, 4
        %s291 = scalar_lea.vmem %s3, %s290
        %v293 = vlaneseq
        %v294 = vand.u32 %v293, 127
        %v295 = vadd.s32 %v294, 128
        %s296 = smul.u32 %s24, 256
        %v297 = vstv %s296
        %v298 = vadd.s32 %v294, %v297
        %v299 = vadd.s32 %v295, %v297
        %v300 = vcvt.s32.f32 %v298
        %v301 = vcvt.s32.f32 %v299
        %v302 = vadd.f32 %v300, 0.5
        %v303 = vadd.f32 %v301, 0.5
        %v304 = vmul.f32 %v302, 0.0625
        %v305 = vmul.f32 %v303, 0.0625
        %v306 = vfloor.f32 %v304
        %v307 = vfloor.f32 %v305
        %v308 = vmul.f32 %v306, 16.0
        %v309 = vmul.f32 %v307, 16.0
        %v310 = vsub.f32 %v300, %v308
        %v311 = vsub.f32 %v301, %v309
        %s312 = smul.u32 %s23, 32
        %s313 = sld [smem:[#allocation2 + %s312]]
        %v314 = vstv %s313
        %v315 = vmul.f32 %v314, %v310
        %v316 = vmul.f32 %v314, %v311
        %s317 = sadd.s32 %s312, 1
        %s318 = sld [smem:[#allocation2 + %s317]]
        %v319 = vstv %s318
        %v320 = vmul.f32 %v319, %v306
        %v321 = vmul.f32 %v319, %v307
        %v322 = vadd.f32 %v315, %v320
        %v323 = vadd.f32 %v316, %v321
        %s324 = sadd.s32 %s312, 2
        %s325 = sld [smem:[#allocation2 + %s324]]
        %v326 = vstv %s325
        %v327 = vadd.f32 %v322, %v326
        %v328 = vadd.f32 %v323, %v326
        %s329 = sadd.s32 %s312, 3
        %s330 = sld [smem:[#allocation2 + %s329]]
        %v331 = vstv %s330
        %v332 = vadd.f32 %v327, %v331
        %v333 = vadd.f32 %v328, %v331
        %s334 = sadd.s32 %s312, 4
        %s335 = sld [smem:[#allocation2 + %s334]]
        %v336 = vstv %s335
        %v337 = vmul.f32 %v336, %v310
        %v338 = vmul.f32 %v336, %v311
        %s339 = sadd.s32 %s312, 5
        %s340 = sld [smem:[#allocation2 + %s339]]
        %v341 = vstv %s340
        %v342 = vmul.f32 %v341, %v306
        %v343 = vmul.f32 %v341, %v307
        %v344 = vadd.f32 %v337, %v342
        %v345 = vadd.f32 %v338, %v343
        %s346 = sadd.s32 %s312, 6
        %s347 = sld [smem:[#allocation2 + %s346]]
        %v348 = vstv %s347
        %v349 = vadd.f32 %v344, %v348
        %v350 = vadd.f32 %v345, %v348
        %s351 = sadd.s32 %s312, 7
        %s352 = sld [smem:[#allocation2 + %s351]]
        %v353 = vstv %s352
        %v354 = vadd.f32 %v349, %v353
        %v355 = vadd.f32 %v350, %v353
        %s356 = sadd.s32 %s312, 8
        %s357 = sld [smem:[#allocation2 + %s356]]
        %v358 = vstv %s357
        %v359 = vmul.f32 %v358, %v310
        %v360 = vmul.f32 %v358, %v311
        %s361 = sadd.s32 %s312, 9
        %s362 = sld [smem:[#allocation2 + %s361]]
        %v363 = vstv %s362
        %v364 = vmul.f32 %v363, %v306
        %v365 = vmul.f32 %v363, %v307
        %v366 = vadd.f32 %v359, %v364
        %v367 = vadd.f32 %v360, %v365
        %s368 = sadd.s32 %s312, 10
        %s369 = sld [smem:[#allocation2 + %s368]]
        %v370 = vstv %s369
        %v371 = vadd.f32 %v366, %v370
        %v372 = vadd.f32 %v367, %v370
        %s373 = sadd.s32 %s312, 11
        %s374 = sld [smem:[#allocation2 + %s373]]
        %v375 = vstv %s374
        %v376 = vadd.f32 %v371, %v375
        %v377 = vadd.f32 %v372, %v375
        %s378 = sadd.s32 %s312, 12
        %s379 = sld [smem:[#allocation2 + %s378]]
        %v380 = vstv %s379
        %v381 = vmul.f32 %v380, %v310
        %v382 = vmul.f32 %v380, %v311
        %s383 = sadd.s32 %s312, 13
        %s384 = sld [smem:[#allocation2 + %s383]]
        %v385 = vstv %s384
        %v386 = vmul.f32 %v385, %v306
        %v387 = vmul.f32 %v385, %v307
        %v388 = vadd.f32 %v381, %v386
        %v389 = vadd.f32 %v382, %v387
        %s390 = sadd.s32 %s312, 14
        %s391 = sld [smem:[#allocation2 + %s390]]
        %v392 = vstv %s391
        %v393 = vadd.f32 %v388, %v392
        %v394 = vadd.f32 %v389, %v392
        %s395 = sadd.s32 %s312, 15
        %s396 = sld [smem:[#allocation2 + %s395]]
        %v397 = vstv %s396
        %v398 = vadd.f32 %v393, %v397
        %v399 = vadd.f32 %v394, %v397
        %v400 = vand.u32 2147483647, %v398
        %v401 = vand.u32 2147483647, %v399
        %vm402 = vcmp.gt.f32.partialorder %v400, 1e-08
        %vm403 = vcmp.gt.f32.partialorder %v401, 1e-08
        %v404 = vrcp.pop %v398
        %v405 = vrcp.pop %v399
        %v406 = vsel %vm402, %v404, 1.0
        %v407 = vsel %vm403, %v405, 1.0
        %v408 = vld [vmem:[%s275] sm:$0x3]
        %v409 = vmul.f32 %v332, %v406
        %v410 = vmul.f32 %v333, %v407
        %v412 = vperm.slane %v408, 0
        %v413 = vperm.slane %v408, 1
        %v416 = vmul.f32 %v409, %v412
        %v417 = vmul.f32 %v410, %v413
        %v418 = vmul.f32 %v354, %v406
        %v419 = vmul.f32 %v355, %v407
        %v420 = vmul.f32 %v418, %v412
        %v421 = vmul.f32 %v419, %v413
        %v422 = vmul.f32 %v376, %v406
        %v423 = vmul.f32 %v377, %v407
        %v424 = vmul.f32 %v422, %v412
        %v425 = vmul.f32 %v423, %v413
        %s426 = sadd.s32 %s312, 16
        %s427 = sld [smem:[#allocation2 + %s426]]
        %v428 = vstv %s427
        %v429 = vmul.f32 %v428, %v416
        %v430 = vmul.f32 %v428, %v417
        %s431 = sadd.s32 %s312, 17
        %s432 = sld [smem:[#allocation2 + %s431]]
        %v433 = vstv %s432
        %v434 = vmul.f32 %v433, %v420
        %v435 = vmul.f32 %v433, %v421
        %v436 = vadd.f32 %v429, %v434
        %v437 = vadd.f32 %v430, %v435
        %s438 = sadd.s32 %s312, 18
        %s439 = sld [smem:[#allocation2 + %s438]]
        %v440 = vstv %s439
        %v441 = vmul.f32 %v440, %v424
        %v442 = vmul.f32 %v440, %v425
        %v443 = vadd.f32 %v436, %v441
        %v444 = vadd.f32 %v437, %v442
        %s445 = sadd.s32 %s312, 19
        %s446 = sld [smem:[#allocation2 + %s445]]
        %v447 = vstv %s446
        %v448 = vadd.f32 %v443, %v447
        %v449 = vadd.f32 %v444, %v447
        %s450 = sadd.s32 %s312, 20
        %s451 = sld [smem:[#allocation2 + %s450]]
        %v452 = vstv %s451
        %v453 = vmul.f32 %v452, %v416
        %v454 = vmul.f32 %v452, %v417
        %s455 = sadd.s32 %s312, 21
        %s456 = sld [smem:[#allocation2 + %s455]]
        %v457 = vstv %s456
        %v458 = vmul.f32 %v457, %v420
        %v459 = vmul.f32 %v457, %v421
        %v460 = vadd.f32 %v453, %v458
        %v461 = vadd.f32 %v454, %v459
        %s462 = sadd.s32 %s312, 22
        %s463 = sld [smem:[#allocation2 + %s462]]
        %v464 = vstv %s463
        %v465 = vmul.f32 %v464, %v424
        %v466 = vmul.f32 %v464, %v425
        %v467 = vadd.f32 %v460, %v465
        %v468 = vadd.f32 %v461, %v466
        %s469 = sadd.s32 %s312, 23
        %s470 = sld [smem:[#allocation2 + %s469]]
        %v471 = vstv %s470
        %v472 = vadd.f32 %v467, %v471
        %v473 = vadd.f32 %v468, %v471
        %s474 = sadd.s32 %s312, 24
        %s475 = sld [smem:[#allocation2 + %s474]]
        %v476 = vstv %s475
        %v477 = vmul.f32 %v476, %v416
        %v478 = vmul.f32 %v476, %v417
        %s479 = sadd.s32 %s312, 25
        %s480 = sld [smem:[#allocation2 + %s479]]
        %v481 = vstv %s480
        %v482 = vmul.f32 %v481, %v420
        %v483 = vmul.f32 %v481, %v421
        %v484 = vadd.f32 %v477, %v482
        %v485 = vadd.f32 %v478, %v483
        %s486 = sadd.s32 %s312, 26
        %s487 = sld [smem:[#allocation2 + %s486]]
        %v488 = vstv %s487
        %v489 = vmul.f32 %v488, %v424
        %v490 = vmul.f32 %v488, %v425
        %v491 = vadd.f32 %v484, %v489
        %v492 = vadd.f32 %v485, %v490
        %s493 = sadd.s32 %s312, 27
        %s494 = sld [smem:[#allocation2 + %s493]]
        %v495 = vstv %s494
        %v496 = vadd.f32 %v491, %v495
        %v497 = vadd.f32 %v492, %v495
        %s498 = sadd.s32 %s312, 28
        %s499 = sld [smem:[#allocation2 + %s498]]
        %v500 = vstv %s499
        %v501 = vmul.f32 %v500, %v416
        %v502 = vmul.f32 %v500, %v417
        %s503 = sadd.s32 %s312, 29
        %s504 = sld [smem:[#allocation2 + %s503]]
        %v505 = vstv %s504
        %v506 = vmul.f32 %v505, %v420
        %v507 = vmul.f32 %v505, %v421
        %v508 = vadd.f32 %v501, %v506
        %v509 = vadd.f32 %v502, %v507
        %s510 = sadd.s32 %s312, 30
        %s511 = sld [smem:[#allocation2 + %s510]]
        %v512 = vstv %s511
        %v513 = vmul.f32 %v512, %v424
        %v514 = vmul.f32 %v512, %v425
        %v515 = vadd.f32 %v508, %v513
        %v516 = vadd.f32 %v509, %v514
        %s517 = sadd.s32 %s312, 31
        %s518 = sld [smem:[#allocation2 + %s517]]
        %v519 = vstv %s518
        %v520 = vadd.f32 %v515, %v519
        %v521 = vadd.f32 %v516, %v519
        %v522 = vand.u32 2147483647, %v520
        %v523 = vand.u32 2147483647, %v521
        %vm524 = vcmp.gt.f32.partialorder %v522, 1e-08
        %vm525 = vcmp.gt.f32.partialorder %v523, 1e-08
        %v526 = vmul.f32 %v520, 1e-12
        %v527 = vmul.f32 %v521, 1e-12
        %v528 = vadd.f32 %v496, %v526
        %v529 = vadd.f32 %v497, %v527
        %v530 = vadd.f32 %v496, 1e-12
        %v531 = vadd.f32 %v497, 1e-12
        %v532 = vsel %vm524, %v528, %v530
        %v533 = vsel %vm525, %v529, %v531
        %v534 = vrcp.pop %v532
        %v535 = vrcp.pop %v533
        %v536 = vmul.f32 %v448, %v534
        %v537 = vmul.f32 %v449, %v535
        %v538 = vmul.f32 %v472, %v534
        %v539 = vmul.f32 %v473, %v535
        %v540 = vand.u32 2147483647, %v536
        %v541 = vand.u32 2147483647, %v537
        %vm542 = vcmp.lt.f32.partialorder %v540, 1e+30
        %vm543 = vcmp.lt.f32.partialorder %v541, 1e+30
        %v544 = vand.u32 2147483647, %v538
        %v545 = vand.u32 2147483647, %v539
        %vm546 = vcmp.lt.f32.partialorder %v544, 1e+30
        %vm547 = vcmp.lt.f32.partialorder %v545, 1e+30
        %vm548 = vmand %vm542, %vm546
        %vm549 = vmand %vm543, %vm547
        %v550 = vsel %vm548, %v536, -2.0
        %v551 = vsel %vm549, %v537, -2.0
        %v552 = vsel %vm548, %v538, -2.0
        %v553 = vsel %vm549, %v539, -2.0
        %v554 = vfloor.f32 %v550
        %v555 = vfloor.f32 %v551
        %v556 = vfloor.f32 %v552
        %v557 = vfloor.f32 %v553
        %v558 = vadd.f32 %v554, 1.0
        %v559 = vadd.f32 %v555, 1.0
        %v560 = vadd.f32 %v556, 1.0
        %v561 = vadd.f32 %v557, 1.0
        %v562 = vsub.f32 %v550, %v554
        %v563 = vsub.f32 %v551, %v555
        %v564 = vsub.f32 1.0, %v562
        %v565 = vsub.f32 1.0, %v563
        %v566 = vsub.f32 %v552, %v556
        %v567 = vsub.f32 %v553, %v557
        %v568 = vsub.f32 1.0, %v566
        %v569 = vsub.f32 1.0, %v567
        %vm570 = vcmp.ge.f32.partialorder %v554, 0.0
        %vm571 = vcmp.ge.f32.partialorder %v555, 0.0
        %vm572 = vcmp.le.f32.partialorder %v554, 15.0
        %vm573 = vcmp.le.f32.partialorder %v555, 15.0
        %vm574 = vmand %vm570, %vm572
        %vm575 = vmand %vm571, %vm573
        %v576 = vsel %vm574, %v564, 0.0
        %v577 = vsel %vm575, %v565, 0.0
        %vm578 = vcmp.ge.f32.partialorder %v558, 0.0
        %vm579 = vcmp.ge.f32.partialorder %v559, 0.0
        %vm580 = vcmp.le.f32.partialorder %v558, 15.0
        %vm581 = vcmp.le.f32.partialorder %v559, 15.0
        %vm582 = vmand %vm578, %vm580
        %vm583 = vmand %vm579, %vm581
        %v584 = vsel %vm582, %v562, 0.0
        %v585 = vsel %vm583, %v563, 0.0
        %vm586 = vcmp.ge.f32.partialorder %v556, 0.0
        %vm587 = vcmp.ge.f32.partialorder %v557, 0.0
        %vm588 = vcmp.le.f32.partialorder %v556, 15.0
        %vm589 = vcmp.le.f32.partialorder %v557, 15.0
        %vm590 = vmand %vm586, %vm588
        %vm591 = vmand %vm587, %vm589
        %v592 = vsel %vm590, %v568, 0.0
        %v593 = vsel %vm591, %v569, 0.0
        %vm594 = vcmp.ge.f32.partialorder %v560, 0.0
        %vm595 = vcmp.ge.f32.partialorder %v561, 0.0
        %vm596 = vcmp.le.f32.partialorder %v560, 15.0
        %vm597 = vcmp.le.f32.partialorder %v561, 15.0
        %vm598 = vmand %vm594, %vm596
        %vm599 = vmand %vm595, %vm597
        %v600 = vsel %vm598, %v566, 0.0
        %v601 = vsel %vm599, %v567, 0.0
        %v602 = vmax.f32 %v554, 0.0
        %v603 = vmax.f32 %v555, 0.0
        %v604 = vmin.f32 %v602, 15.0
        %v605 = vmin.f32 %v603, 15.0
        %v606 = vcvt.f32.s32.to.zero.pseudo %v604
        %v607 = vcvt.f32.s32.to.zero.pseudo %v605
        %v608 = vmax.f32 %v558, 0.0
        %v609 = vmax.f32 %v559, 0.0
        %v610 = vmin.f32 %v608, 15.0
        %v611 = vmin.f32 %v609, 15.0
        %v612 = vcvt.f32.s32.to.zero.pseudo %v610
        %v613 = vcvt.f32.s32.to.zero.pseudo %v611
        %v614 = vmax.f32 %v556, 0.0
        %v615 = vmax.f32 %v557, 0.0
        %v616 = vmin.f32 %v614, 15.0
        %v617 = vmin.f32 %v615, 15.0
        %v618 = vcvt.f32.s32.to.zero.pseudo %v616
        %v619 = vcvt.f32.s32.to.zero.pseudo %v617
        %v620 = vmax.f32 %v560, 0.0
        %v621 = vmax.f32 %v561, 0.0
        %v622 = vmin.f32 %v620, 15.0
        %v623 = vmin.f32 %v621, 15.0
        %v624 = vcvt.f32.s32.to.zero.pseudo %v622
        %v625 = vcvt.f32.s32.to.zero.pseudo %v623
        %v626 = vlaneseq
        %v627 = vshrl.u32 %v626, 7
        %v628 = vadd.s32 %v627, 8
        %v629 = vperm.slane %v606, 0
        %v630 = vperm.slane %v607, 0
        %vm631 = vcmp.eq.s32.totalorder %v627, %v629
        %vm632 = vcmp.eq.s32.totalorder %v627, %v630
        %vm633 = vcmp.eq.s32.totalorder %v628, %v629
        %vm634 = vcmp.eq.s32.totalorder %v628, %v630
        %v635 = vperm.slane %v576, 0
        %v636 = vperm.slane %v577, 0
        %v637 = vsel %vm631, %v635, 0.0
        %v638 = vsel %vm632, %v636, 0.0
        %v639 = vsel %vm633, %v635, 0.0
        %v640 = vsel %vm634, %v636, 0.0
        %v641 = vperm.slane %v612, 0
        %v642 = vperm.slane %v613, 0
        %vm643 = vcmp.eq.s32.totalorder %v627, %v641
        %vm644 = vcmp.eq.s32.totalorder %v627, %v642
        %vm645 = vcmp.eq.s32.totalorder %v628, %v641
        %vm646 = vcmp.eq.s32.totalorder %v628, %v642
        %v647 = vperm.slane %v584, 0
        %v648 = vperm.slane %v585, 0
        %v649 = vsel %vm643, %v647, 0.0
        %v650 = vsel %vm644, %v648, 0.0
        %v651 = vsel %vm645, %v647, 0.0
        %v652 = vsel %vm646, %v648, 0.0
        %v653 = vadd.f32 %v637, %v649
        %v654 = vadd.f32 %v638, %v650
        %v655 = vadd.f32 %v639, %v651
        %v656 = vadd.f32 %v640, %v652
        %v657 = vperm.slane %v618, 0
        %v658 = vperm.slane %v619, 0
        %vm659 = vcmp.eq.s32.totalorder %v627, %v657
        %vm660 = vcmp.eq.s32.totalorder %v627, %v658
        %vm661 = vcmp.eq.s32.totalorder %v628, %v657
        %vm662 = vcmp.eq.s32.totalorder %v628, %v658
        %v663 = vperm.slane %v592, 0
        %v664 = vperm.slane %v593, 0
        %v665 = vsel %vm659, %v663, 0.0
        %v666 = vsel %vm660, %v664, 0.0
        %v667 = vsel %vm661, %v663, 0.0
        %v668 = vsel %vm662, %v664, 0.0
        %v669 = vperm.slane %v624, 0
        %v670 = vperm.slane %v625, 0
        %vm671 = vcmp.eq.s32.totalorder %v627, %v669
        %vm672 = vcmp.eq.s32.totalorder %v627, %v670
        %vm673 = vcmp.eq.s32.totalorder %v628, %v669
        %vm674 = vcmp.eq.s32.totalorder %v628, %v670
        %v675 = vperm.slane %v600, 0
        %v676 = vperm.slane %v601, 0
        %v677 = vsel %vm671, %v675, 0.0
        %v678 = vsel %vm672, %v676, 0.0
        %v679 = vsel %vm673, %v675, 0.0
        %v680 = vsel %vm674, %v676, 0.0
        %v681 = vadd.f32 %v665, %v677
        %v682 = vadd.f32 %v666, %v678
        %v683 = vadd.f32 %v667, %v679
        %v684 = vadd.f32 %v668, %v680
        %v685 = vld [vmem:[%s291] sm:$0xf]
        %v686 = vld [vmem:[%s291 + $0x4] sm:$0xf]
        %v687 = vld [vmem:[%s291 + $0x8] sm:$0xf]
        %v688 = vld [vmem:[%s291 + $0xc] sm:$0xf]
        %v689 = vld [vmem:[%s291 + $0x10] sm:$0xf]
        %v690 = vld [vmem:[%s291 + $0x14] sm:$0xf]
        %v691 = vpack.c.bf16 %v655, %v653
        %v692 = vpack.c.bf16 %v656, %v654
        %v699 = vunpack.c.l.b16 %v685
        %v700 = vunpack.c.l.b16 %v686
        %v701 = vunpack.c.l.b16 %v687
        %v702 = vunpack.c.l.b16 %v688
        %v703 = vunpack.c.l.b16 %v689
        %v704 = vunpack.c.l.b16 %v690
        %v705 = vpack.c.b16 %v700, %v699
        %v706 = vpack.c.b16 %v702, %v701
        %v707 = vpack.c.b16 %v704, %v703
        %vm708 = vcmask 130048
        %v710 = vsel %vm708, %v705, 0
        %v713 = vsel %vm708, %v706, 0
        %v716 = vsel %vm708, %v707, 0
        %718 = vmatpush.bf16.msra.mxu0 0
        %719 = vmatpush.bf16.msra.mxu0 0
        %720 = vmatpush.bf16.msra.mxu0 0
        %721 = vmatpush.bf16.msra.mxu0 0
        %722 = vmatpush.bf16.msra.mxu0 0
        %723 = vmatpush.bf16.msra.mxu0 0
        %724 = vmatpush.bf16.msra.mxu0 0
        %725 = vmatpush.bf16.msra.mxu0 %v691
        %726 = vmatmul.bf16.gmra.mxu0 %v710
        %v727 = vpop.f32.mrf.mxu0
        %v728 = vadd.f32 0.0, %v727
        %v729 = vpop.f32.mrf.mxu0
        %v730 = vadd.f32 0.0, %v729
        %731 = vmatmul.bf16.gmra.mxu0 %v713
        %v732 = vpop.f32.mrf.mxu0
        %v733 = vadd.f32 0.0, %v732
        %v734 = vpop.f32.mrf.mxu0
        %v735 = vadd.f32 0.0, %v734
        %736 = vmatmul.bf16.gmra.mxu0 %v716
        %v737 = vpop.f32.mrf.mxu0
        %v738 = vadd.f32 0.0, %v737
        %v739 = vpop.f32.mrf.mxu0
        %v740 = vadd.f32 0.0, %v739
        %741 = vdwg.mxu0
        %742 = vmatpush.bf16.msra.mxu0 0
        %743 = vmatpush.bf16.msra.mxu0 0
        %744 = vmatpush.bf16.msra.mxu0 0
        %745 = vmatpush.bf16.msra.mxu0 0
        %746 = vmatpush.bf16.msra.mxu0 0
        %747 = vmatpush.bf16.msra.mxu0 0
        %748 = vmatpush.bf16.msra.mxu0 0
        %749 = vmatpush.bf16.msra.mxu0 %v692
        %750 = vmatmul.bf16.gmra.mxu0 %v710
        %v751 = vpop.f32.mrf.mxu0
        %v752 = vadd.f32 0.0, %v751
        %v753 = vpop.f32.mrf.mxu0
        %v754 = vadd.f32 0.0, %v753
        %755 = vmatmul.bf16.gmra.mxu0 %v713
        %v756 = vpop.f32.mrf.mxu0
        %v757 = vadd.f32 0.0, %v756
        %v758 = vpop.f32.mrf.mxu0
        %v759 = vadd.f32 0.0, %v758
        %760 = vmatmul.bf16.gmra.mxu0 %v716
        %v761 = vpop.f32.mrf.mxu0
        %v762 = vadd.f32 0.0, %v761
        %v763 = vpop.f32.mrf.mxu0
        %v764 = vadd.f32 0.0, %v763
        %765 = vdwg.mxu0
        %v766 = vld [vmem:[%s285] sm:$0x77]
        %v767 = vmul.f32 %v728, %v681
        %v768 = vmul.f32 %v752, %v682
        %v769 = vmul.f32 %v730, %v683
        %v770 = vmul.f32 %v754, %v684
        %v771 = vadd.f32 %v767, %v769
        %v772 = vrot.slane %v771, 4
        %v773 = vadd.f32 %v771, %v772
        %v774 = vrot.slane %v773, 2
        %v775 = vadd.f32 %v773, %v774
        %v776 = vrot.slane %v775, 1
        %v777 = vadd.f32 %v775, %v776
        %v778 = vadd.f32 %v768, %v770
        %v779 = vrot.slane %v778, 4
        %v780 = vadd.f32 %v778, %v779
        %v781 = vrot.slane %v780, 2
        %v782 = vadd.f32 %v780, %v781
        %v783 = vrot.slane %v782, 1
        %v784 = vadd.f32 %v782, %v783
        %v787 = vrot.slane %v784, 4
        %vm788 = vcmask 1043456
        %v789 = vsel %vm788, %v777, %v787
        %v791 = vsub.f32 %v766, %v789
        %v792 = vand.u32 2147483647, %v791
        %v793 = vadd.f32 %v792, 0.0
        %v794 = vadd.f32 %v777, 0.0
        %v795 = vadd.f32 %v784, 0.0
        %v796 = vmul.f32 %v733, %v681
        %v797 = vmul.f32 %v757, %v682
        %v798 = vmul.f32 %v735, %v683
        %v799 = vmul.f32 %v759, %v684
        %v800 = vadd.f32 %v796, %v798
        %v801 = vrot.slane %v800, 4
        %v802 = vadd.f32 %v800, %v801
        %v803 = vrot.slane %v802, 2
        %v804 = vadd.f32 %v802, %v803
        %v805 = vrot.slane %v804, 1
        %v806 = vadd.f32 %v804, %v805
        %v807 = vadd.f32 %v797, %v799
        %v808 = vrot.slane %v807, 4
        %v809 = vadd.f32 %v807, %v808
        %v810 = vrot.slane %v809, 2
        %v811 = vadd.f32 %v809, %v810
        %v812 = vrot.slane %v811, 1
        %v813 = vadd.f32 %v811, %v812
        %v816 = vrot.slane %v813, 4
        %v817 = vsel %vm788, %v806, %v816
        %v818 = vrot.slane %v817, 7
        %v820 = vsub.f32 %v766, %v818
        %v821 = vand.u32 2147483647, %v820
        %v823 = vrot.slane %v821, 5
        %v824 = vrot.slane %v823, 4
        %v826 = vadd.f32 %v793, %v824
        %v827 = vadd.f32 %v794, %v806
        %v828 = vadd.f32 %v795, %v813
        %v829 = vmul.f32 %v738, %v681
        %v830 = vmul.f32 %v762, %v682
        %v831 = vmul.f32 %v740, %v683
        %v832 = vmul.f32 %v764, %v684
        %v833 = vadd.f32 %v829, %v831
        %v834 = vrot.slane %v833, 4
        %v835 = vadd.f32 %v833, %v834
        %v836 = vrot.slane %v835, 2
        %v837 = vadd.f32 %v835, %v836
        %v838 = vrot.slane %v837, 1
        %v839 = vadd.f32 %v837, %v838
        %v840 = vadd.f32 %v830, %v832
        %v841 = vrot.slane %v840, 4
        %v842 = vadd.f32 %v840, %v841
        %v843 = vrot.slane %v842, 2
        %v844 = vadd.f32 %v842, %v843
        %v845 = vrot.slane %v844, 1
        %v846 = vadd.f32 %v844, %v845
        %v849 = vrot.slane %v846, 4
        %v850 = vsel %vm788, %v839, %v849
        %v851 = vrot.slane %v850, 6
        %v853 = vsub.f32 %v766, %v851
        %v854 = vand.u32 2147483647, %v853
        %v856 = vrot.slane %v854, 6
        %v857 = vrot.slane %v856, 4
        %v859 = vadd.f32 %v826, %v857
        %v860 = vadd.f32 %v827, %v839
        %v861 = vadd.f32 %v828, %v846
        %863 = vst [vmem:[#allocation1] ss:$2 sm:$0xff] %v766
        %v864 = vld.sshfl [vmem:[#allocation1] sm:$0xff pattern:$0x75316420]
        %v865 = vld.sshfl [vmem:[#allocation1 + $0x8] sm:$0xff pattern:$0x75316420]
        %vm868 = vcmask 1042432
        %v869 = vsel %vm868, %v864, 0.0
        %v870 = vrot.slane %v869, 4
        %v871 = vadd.f32 %v869, %v870
        %v872 = vrot.slane %v871, 2
        %v873 = vadd.f32 %v871, %v872
        %v874 = vrot.slane %v873, 1
        %v875 = vadd.f32 %v873, %v874
        %v876 = vsel %vm868, %v865, 0.0
        %v877 = vrot.slane %v876, 4
        %v878 = vadd.f32 %v876, %v877
        %v879 = vrot.slane %v878, 2
        %v880 = vadd.f32 %v878, %v879
        %v881 = vrot.slane %v880, 1
        %v882 = vadd.f32 %v880, %v881
        %vm883 = vcmp.gt.f32.partialorder %v860, 0.0
        %vm884 = vcmp.gt.f32.partialorder %v861, 0.0
        %vm885 = vcmp.gt.f32.partialorder %v875, 0.0
        %vm886 = vcmp.gt.f32.partialorder %v882, 0.0
        %vm887 = vmand %vm883, %vm885
        %vm888 = vmand %vm884, %vm886
        %v889 = vsel %vm887, 1, 0
        %v890 = vsel %vm888, 1, 0
        %v891 = vcvt.s32.f32 %v889
        %v892 = vcvt.s32.f32 %v890
        %v895 = vrot.slane %v892, 4
        %v896 = vsel %vm788, %v891, %v895
        %v898 = vmul.f32 %v859, %v896
        %v900 = vperm.slane %v898, 0
        %v901 = vperm.slane %v898, 4
        %vm904 = vcmask 1040384
        %v905 = vsel %vm904, %v900, 0.0
        %v906 = vsel %vm904, %v901, 0.0
        %v907 = vadd.f32 %v905, %v906
        %908 = vadd.xlane.f32.xlu0 %v907
        %v909 = vpop.xlane.xlu0 %908
        %v910 = vadd.f32 %v891, %v892
        %911 = vadd.xlane.f32.xlu0 %v910
        %v912 = vpop.xlane.xlu0 %911
        %vm913 = vcmp.eq.s32.totalorder %v294, 0
        %vm914 = vcmp.eq.s32.totalorder %v294, 1
        %v915 = vsel %vm914, %v912, 0.0
        %v916 = vsel %vm913, %v909, %v915
        %917 = vst [vmem:[%s267] sm:$0x1] %v916
        %s918 = sand.u32 %s144, 1
        %s919 = scalar_lea.sflag [#allocation3], %s918
        %s920 = sand.u32 %s144, 1
        %s921 = scalar_lea.vmem [#allocation5], %s920
        // Predicated region
        $region41: #{tpu_custom_call.1} parent=35 // pred_check
          %p922 = pneg %p154
        $region42: #{tpu_custom_call.1} parent=35 // pred_check_branch
          %924 = sbr.rel (%p922) target = $region44
        $region43: #{tpu_custom_call.1} parent=35 // pred_region
          %926 = vsyncadd %s919, 0
          %s927 = sadd.s32 %s24, %s23
          %s928 = scalar_lea.hbm %s4, %s927
          %s930 = sshll.u32 %s921, 4
          %s931 = int_to_ptr.vmem [resolvable:$true] %s930
          %s932 = sshll.u32 %s928, 4
          %s933 = int_to_ptr.hbm [resolvable:$true] %s932
          %935 = dma.vmem_to_hbm [thread:$0]  %s931, 16, %s933, %s919
        $region44: #{tpu_custom_call.1} parent=35 // pred_fallthru
          _
      $region36: #{tpu_custom_call.1} parent=5 // pred_fallthru
        _
      %p936 = scmp.le.s32.totalorder 2, %s14
      // Predicated region
      $region45: #{tpu_custom_call.1} parent=5 // pred_check
        %p937 = pneg %p936
      $region46: #{tpu_custom_call.1} parent=5 // pred_check_branch
        %939 = sbr.rel (%p937) target = $region48
      $region47: #{tpu_custom_call.1} parent=5 // pred_region
        %s940 = ssub.s32 %s14, 2
        // Predicated region
        $region49: #{tpu_custom_call.1} parent=47 // pred_check
          %p941 = pneg %p160
        $region50: #{tpu_custom_call.1} parent=47 // pred_check_branch
          %943 = sbr.rel (%p941) target = $region52
        $region51: #{tpu_custom_call.1} parent=47 // pred_region
          %s944 = sand.u32 %s145, 1
          %s945 = scalar_lea.sflag [#allocation3], %s944
          %s946 = sand.u32 %s145, 1
          %s947 = scalar_lea.vmem [#allocation5], %s946
          %949 = dma.done %s945, 16
        $region52: #{tpu_custom_call.1} parent=47 // pred_fallthru
          _
      $region48: #{tpu_custom_call.1} parent=5 // pred_fallthru
        _
    $region6: #{tpu_custom_call.1} parent=1 // loop_footer
      %s18 = sadd.s32 1, %s14
    $region7: #{tpu_custom_call.1} parent=1 // loop_footer_branch
      %13 = sbr.rel target = $region3
    $region8: #{tpu_custom_call.1} parent=1 // loop_exit
      _
    %950 = vsyncpa [#allocation3], 1
    %s951 = scalar_lea.sflag [#allocation3], 1
    %952 = vsyncpa %s951, 1
    %953 = vsyncpa [#allocation4], 1
    %s954 = scalar_lea.sflag [#allocation4], 1
    %955 = vsyncpa %s954, 1

</llo_original>
